<compile_context>
chip_gen: v7x
topology: tpu7x:2x2x1
jax: 0.10.0
libtpu: 0.0.40
codegen_flags: <defaults>
</compile_context>

<pallas_src>
import math

import jax
import jax.numpy as jnp
from jax import lax
from jax.experimental import pallas as pl
from jax.experimental.pallas import tpu as pltpu

LSTM_HIDDEN = 32
HIDDEN_SIZES = [16, 8, 4]
LEAKY_SLOPE = 0.01
BN_EPS = 1e-5


def _head_layout(output_size):
    """Row layout of the packed MLP-head parameter array (width = LSTM_HIDDEN)."""
    layout = {}
    row = 0
    in_sz = LSTM_HIDDEN
    for i, out_sz in enumerate(HIDDEN_SIZES):
        layout[f"w{i}"] = (row, in_sz, out_sz)
        row += in_sz
        layout[f"b{i}"] = (row, 1, out_sz)
        row += 1
        layout[f"g{i}"] = (row, 1, out_sz)
        row += 1
        layout[f"be{i}"] = (row, 1, out_sz)
        row += 1
        in_sz = out_sz
    layout["w_out"] = (row, in_sz, output_size)
    row += in_sz
    layout["b_out"] = (row, 1, output_size)
    row += 1
    return layout, row


def lstm_mlp_kernel(x_ref, lstm_ref, head_ref, o_ref):
    T, F = x_ref.shape
    H = LSTM_HIDDEN
    out_sz = o_ref.shape[1]

    # --- Packed LSTM operands (single VMEM input) -----------------------------
    # rows 0:F     -> layer-0 input weights (layer-1 columns are zero)
    # rows F:F+2H  -> fused recurrent weight for carried state [h1 | h0]
    # row  F+2H    -> fused bias (b_ih + b_hh, both layers)
    w_hh = lstm_ref[F:F + 2 * H, :]                                    # (2H, 8H)
    b_wide = lstm_ref[F + 2 * H:F + 2 * H + 1, :]                      # (1, 8H)

    # Hoisted input projection: one (T,F)@(F,8H) matmul + bias for the sequence.
    xp = jnp.dot(x_ref[...], lstm_ref[0:F, :],
                 preferred_element_type=jnp.float32) + b_wide          # (T, 8H)

    # Fused gate columns, per 2H-wide gate group (gate order i, f, g, o):
    # low H lanes = layer 1, high H lanes = layer 0.
    def lstm_act(gates, c):
        sig = jax.nn.sigmoid(gates)             # one full-width EUP pass, (1, 8H)
        i = sig[:, 0:2 * H]
        f = sig[:, 2 * H:4 * H]
        g = jnp.tanh(gates[:, 4 * H:6 * H])
        o = sig[:, 6 * H:8 * H]
        c_new = f * c + i * g
        h_new = o * jnp.tanh(c_new)
        return h_new, c_new                     # both (1, 2H) = [layer1 | layer0]

    # TODO(synk): if a bundle dump shows Mosaic re-staging w_hh each step, switch
    # to pltpu.matmul_push_rhs once before the loop + matmul_acc_lhs/matmul_pop
    # per step (two 128-wide halves on separate mxu_index for v5e) to keep the
    # fused weight resident in the MXU across the whole recurrence.
    def wide_step(xp_row, h, c):
        # One fused MXU op per step: layer-0 recurrence, layer-1 recurrence and
        # layer-1's input projection (block-structured weight).
        gates = xp_row + jnp.dot(h, w_hh, preferred_element_type=jnp.float32)
        return lstm_act(gates, c)

    # Step 0 special case: h = c = 0, so gates = xp[0] (no matmul) and only the
    # layer-0 gate halves are needed; layer 1 has not started, so h1 = c1 = 0.
    xp0 = xp[0:1]
    i0 = jax.nn.sigmoid(xp0[:, 1 * H:2 * H])
    g0 = jnp.tanh(xp0[:, 5 * H:6 * H])
    o0 = jax.nn.sigmoid(xp0[:, 7 * H:8 * H])
    c0 = i0 * g0                                # f * c = 0
    h0 = o0 * jnp.tanh(c0)
    zH = jnp.zeros((1, H), jnp.float32)
    h = jnp.concatenate([zH, h0], axis=1)       # [h1 | h0]
    c = jnp.concatenate([zH, c0], axis=1)

    # Wavefront over the two stacked layers, fully unrolled (static, small T):
    # combined step s runs layer-0 timestep s and layer-1 timestep s-1.  The
    # layer-1 sequence stays register-resident; h[:, 0:H] is lane-aligned.
    # TODO(synk): for long seq_len switch to lax.fori_loop(..., unroll=8) with
    # (8, H) buffered stores and tile xp / the MLP head over T with a grid.
    hs = []
    for s in range(1, T):
        h, c = wide_step(xp[s:s + 1], h, c)
        hs.append(h[:, 0:H])                    # layer-1 output, timestep s-1
    # Drain step: layer-1 timestep T-1.  The layer-0 half computes a bogus extra
    # timestep from bias only; harmless — final (h, c) are discarded (the module
    # discards the LSTM state too).
    h, c = wide_step(b_wide, h, c)
    hs.append(h[:, 0:H])
    y = jnp.concatenate(hs, axis=0)             # (T, H) layer-1 hidden sequence

    # --- MLP head: 3x (Linear -> LeakyReLU -> BatchNorm1d) + final Linear -----
    layout, _ = _head_layout(out_sz)

    def take(name):
        r, nr, nc = layout[name]
        return head_ref[r:r + nr, 0:nc]

    for i in range(len(HIDDEN_SIZES)):
        y = jnp.dot(y, take(f"w{i}"), preferred_element_type=jnp.float32) + take(f"b{i}")
        y = jnp.where(y > 0, y, LEAKY_SLOPE * y)
        mean = jnp.mean(y, axis=0, keepdims=True)
        var = jnp.mean((y - mean) ** 2, axis=0, keepdims=True)    # biased variance
        y = (y - mean) * lax.rsqrt(var + BN_EPS)
        y = y * take(f"g{i}") + take(f"be{i}")
    o_ref[...] = (jnp.dot(y, take("w_out"), preferred_element_type=jnp.float32)
                  + take("b_out"))


def _fuse_lstm_params(p):
    """Pack all LSTM operands into one (F + 2H + 1, 8H) array.

    Fused gate columns, per 2H-wide gate group (PyTorch gate order i, f, g, o):
      low H lanes -> layer 1, high H lanes -> layer 0
    so the carried state is [h1 | h0] and layer-1's output is lane-aligned.
      rows 0:F      -> W_ih_l0.T into layer-0 columns (layer-1 columns zero)
      rows F:F+H    -> (h1 rows) W_hh_l1.T into layer-1 columns
      rows F+H:F+2H -> (h0 rows) W_hh_l0.T into layer-0 cols, W_ih_l1.T into layer-1 cols
      row  F+2H     -> b_ih + b_hh for both layers
    """
    H = LSTM_HIDDEN
    F = p["W_ih_l0"].shape[1]
    fused = jnp.zeros((F + 2 * H + 1, 8 * H), jnp.float32)
    b0 = p["b_ih_l0"] + p["b_hh_l0"]
    b1 = p["b_ih_l1"] + p["b_hh_l1"]
    for g in range(4):                       # PyTorch gate order: i, f, g, o
        rows = slice(g * H, (g + 1) * H)     # rows of the per-layer (4H, in) weights
        c1 = (2 * g) * H                     # fused columns, layer 1 (low half)
        c0 = (2 * g + 1) * H                 # fused columns, layer 0 (high half)
        fused = fused.at[0:F, c0:c0 + H].set(p["W_ih_l0"][rows, :].T)
        fused = fused.at[F:F + H, c1:c1 + H].set(p["W_hh_l1"][rows, :].T)
        fused = fused.at[F + H:F + 2 * H, c0:c0 + H].set(p["W_hh_l0"][rows, :].T)
        fused = fused.at[F + H:F + 2 * H, c1:c1 + H].set(p["W_ih_l1"][rows, :].T)
        fused = fused.at[F + 2 * H, c0:c0 + H].set(b0[rows])
        fused = fused.at[F + 2 * H, c1:c1 + H].set(b1[rows])
    return fused


def _pack_head_params(p, output_size):
    """Pack the 14 tiny MLP-head parameters into one (rows, LSTM_HIDDEN) array."""
    layout, nrows = _head_layout(output_size)
    head = jnp.zeros((nrows, LSTM_HIDDEN), jnp.float32)
    entries = []
    for i in range(len(HIDDEN_SIZES)):
        entries += [
            (f"w{i}", p[f"blk_w{i}"].T),
            (f"b{i}", p[f"blk_b{i}"][None, :]),
            (f"g{i}", p[f"gamma{i}"][None, :]),
            (f"be{i}", p[f"beta{i}"][None, :]),
        ]
    entries += [("w_out", p["w_out"].T), ("b_out", p["b_out"][None, :])]
    for name, val in entries:
        r, nr, nc = layout[name]
        head = head.at[r:r + nr, 0:nc].set(val)
    return head


@jax.jit
def lstm_forward(x, params):
    seq_len, _ = x.shape
    output_size = params["w_out"].shape[0]
    lstm_fused = _fuse_lstm_params(params)
    head = _pack_head_params(params, output_size)
    vmem = pl.BlockSpec(memory_space=pltpu.MemorySpace.VMEM)   # everything resident
    return pl.pallas_call(
        lstm_mlp_kernel,
        out_shape=jax.ShapeDtypeStruct((seq_len, output_size), jnp.float32),
        in_specs=[vmem, vmem, vmem],
        out_specs=vmem,
    )(x, lstm_fused, head)


def init_params(key, input_size, output_size):
    """Deterministic init with PyTorch-default shapes / bounds, standard layout."""
    keys = iter(jax.random.split(key, 32))

    def u(shape, bound):
        return jax.random.uniform(next(keys), shape, jnp.float32, -bound, bound)

    H = LSTM_HIDDEN
    k = 1.0 / math.sqrt(H)
    p = {}
    p["W_ih_l0"] = u((4 * H, input_size), k)
    p["W_hh_l0"] = u((4 * H, H), k)
    p["b_ih_l0"] = u((4 * H,), k)
    p["b_hh_l0"] = u((4 * H,), k)
    p["W_ih_l1"] = u((4 * H, H), k)
    p["W_hh_l1"] = u((4 * H, H), k)
    p["b_ih_l1"] = u((4 * H,), k)
    p["b_hh_l1"] = u((4 * H,), k)
    in_sz = H
    for i, out_sz in enumerate(HIDDEN_SIZES):
        bnd = 1.0 / math.sqrt(in_sz)
        p[f"blk_w{i}"] = u((out_sz, in_sz), bnd)
        p[f"blk_b{i}"] = u((out_sz,), bnd)
        p[f"gamma{i}"] = jnp.ones((out_sz,), jnp.float32)
        p[f"beta{i}"] = jnp.zeros((out_sz,), jnp.float32)
        in_sz = out_sz
    bnd = 1.0 / math.sqrt(in_sz)
    p["w_out"] = u((output_size, in_sz), bnd)
    p["b_out"] = u((output_size,), bnd)
    return p


def lstm_reference(x, p):
    """Pure-JAX reference in standard PyTorch layout (for correctness check)."""
    H = LSTM_HIDDEN

    def run_layer(xs, W_ih, W_hh, b_ih, b_hh):
        def step(carry, x_t):
            h, c = carry
            gates = jnp.dot(W_ih, x_t) + jnp.dot(W_hh, h) + b_ih + b_hh
            i = jax.nn.sigmoid(gates[0:H])
            f = jax.nn.sigmoid(gates[H:2 * H])
            g = jnp.tanh(gates[2 * H:3 * H])
            o = jax.nn.sigmoid(gates[3 * H:4 * H])
            c = f * c + i * g
            h = o * jnp.tanh(c)
            return (h, c), h

        init = (jnp.zeros((H,), jnp.float32), jnp.zeros((H,), jnp.float32))
        _, hs = lax.scan(step, init, xs)
        return hs

    y = run_layer(x, p["W_ih_l0"], p["W_hh_l0"], p["b_ih_l0"], p["b_hh_l0"])
    y = run_layer(y, p["W_ih_l1"], p["W_hh_l1"], p["b_ih_l1"], p["b_hh_l1"])
    for i in range(len(HIDDEN_SIZES)):
        y = jnp.dot(y, p[f"blk_w{i}"].T) + p[f"blk_b{i}"]
        y = jnp.where(y > 0, y, LEAKY_SLOPE * y)
        mean = jnp.mean(y, axis=0, keepdims=True)
        var = jnp.mean((y - mean) ** 2, axis=0, keepdims=True)
        y = (y - mean) * lax.rsqrt(var + BN_EPS)
        y = y * p[f"gamma{i}"] + p[f"beta{i}"]
    return jnp.dot(y, p["w_out"].T) + p["b_out"]


if __name__ == "__main__":
    key = jax.random.PRNGKey(0)
    input_size, output_size, seq_len = 8, 2, 16
    pkey, xkey = jax.random.split(key)
    params = init_params(pkey, input_size, output_size)
    x = jax.random.normal(xkey, (seq_len, input_size), jnp.float32)

    y = lstm_forward(x, params)
    jax.block_until_ready(y)
    assert y.shape == (seq_len, output_size) and y.dtype == jnp.float32
    assert bool(jnp.all(jnp.isfinite(y)))

    # Sanity check against a pure-JAX reference (loose tol: MXU precision differs).
    y_ref = lstm_reference(x, params)
    err = float(jnp.max(jnp.abs(y - y_ref)))
    assert err < 1e-1, f"kernel/reference mismatch: max abs err = {err}"

    print("KERNEL_OK")
</pallas_src>

<mosaic_0001>
module attributes {stable_mosaic.version = 11 : i64} {
  func.func @lstm_mlp_kernel(%arg0: memref<16x8xf32, #tpu.memory_space<vmem>>, %arg1: memref<73x256xf32, #tpu.memory_space<vmem>>, %arg2: memref<70x32xf32, #tpu.memory_space<vmem>>, %arg3: memref<16x2xf32, #tpu.memory_space<vmem>>) attributes {dimension_semantics = [], scalar_prefetch = 0 : i64, scratch_operands = 0 : i64, tpu.core_type = #tpu.core_type<tc>} {
    %c8 = arith.constant 8 : index
    %c0 = arith.constant 0 : index
    %0 = vector.load %arg1[%c8, %c0] : memref<73x256xf32, #tpu.memory_space<vmem>>, vector<64x256xf32>
    %c72 = arith.constant 72 : index
    %c0_0 = arith.constant 0 : index
    %1 = vector.load %arg1[%c72, %c0_0] : memref<73x256xf32, #tpu.memory_space<vmem>>, vector<1x256xf32>
    %c0_1 = arith.constant 0 : index
    %c0_2 = arith.constant 0 : index
    %2 = vector.load %arg0[%c0_1, %c0_2] : memref<16x8xf32, #tpu.memory_space<vmem>>, vector<16x8xf32>
    %c0_3 = arith.constant 0 : index
    %c0_4 = arith.constant 0 : index
    %3 = vector.load %arg1[%c0_3, %c0_4] : memref<73x256xf32, #tpu.memory_space<vmem>>, vector<8x256xf32>
    %cst = arith.constant dense<0.000000e+00> : vector<16x256xf32>
    %4 = tpu.matmul %2, %3, %cst {dimension_numbers = #tpu.dot_dimension_numbers<[1], [0], [0], [1], [0, 0, 1, 1], [], []>} : vector<16x8xf32>, vector<8x256xf32>, vector<16x256xf32> -> vector<16x256xf32>
    %5 = vector.broadcast %1 : vector<1x256xf32> to vector<16x256xf32>
    %6 = arith.addf %4, %5 : vector<16x256xf32>
    %7 = vector.extract_strided_slice %6 {offsets = [0, 0], sizes = [1, 256], strides = [1, 1]} : vector<16x256xf32> to vector<1x256xf32>
    %8 = vector.extract_strided_slice %7 {offsets = [0, 32], sizes = [1, 32], strides = [1, 1]} : vector<1x256xf32> to vector<1x32xf32>
    %9 = arith.negf %8 : vector<1x32xf32>
    %10 = math.exp %9 : vector<1x32xf32>
    %cst_5 = arith.constant 1.000000e+00 : f32
    %11 = vector.broadcast %cst_5 : f32 to vector<1x32xf32>
    %12 = arith.addf %11, %10 : vector<1x32xf32>
    %13 = arith.divf %11, %12 : vector<1x32xf32>
    %14 = vector.extract_strided_slice %7 {offsets = [0, 160], sizes = [1, 32], strides = [1, 1]} : vector<1x256xf32> to vector<1x32xf32>
    %15 = math.tanh %14 : vector<1x32xf32>
    %16 = vector.extract_strided_slice %7 {offsets = [0, 224], sizes = [1, 32], strides = [1, 1]} : vector<1x256xf32> to vector<1x32xf32>
    %17 = arith.negf %16 : vector<1x32xf32>
    %18 = math.exp %17 : vector<1x32xf32>
    %cst_6 = arith.constant 1.000000e+00 : f32
    %19 = vector.broadcast %cst_6 : f32 to vector<1x32xf32>
    %20 = arith.addf %19, %18 : vector<1x32xf32>
    %21 = arith.divf %19, %20 : vector<1x32xf32>
    %22 = arith.mulf %13, %15 : vector<1x32xf32>
    %23 = math.tanh %22 : vector<1x32xf32>
    %24 = arith.mulf %21, %23 : vector<1x32xf32>
    %cst_7 = arith.constant 0.000000e+00 : f32
    %25 = vector.broadcast %cst_7 : f32 to vector<1x32xf32>
    %26 = tpu.concatenate %25, %24 in 1 : vector<1x32xf32>, vector<1x32xf32> -> vector<1x64xf32>
    %27 = tpu.concatenate %25, %22 in 1 : vector<1x32xf32>, vector<1x32xf32> -> vector<1x64xf32>
    %28 = vector.extract_strided_slice %6 {offsets = [1, 0], sizes = [1, 256], strides = [1, 1]} : vector<16x256xf32> to vector<1x256xf32>
    %cst_8 = arith.constant dense<0.000000e+00> : vector<1x256xf32>
    %29 = tpu.matmul %26, %0, %cst_8 {dimension_numbers = #tpu.dot_dimension_numbers<[1], [0], [0], [1], [0, 0, 1, 1], [], []>} : vector<1x64xf32>, vector<64x256xf32>, vector<1x256xf32> -> vector<1x256xf32>
    %30 = arith.addf %28, %29 : vector<1x256xf32>
    %31 = arith.negf %30 : vector<1x256xf32>
    %32 = math.exp %31 : vector<1x256xf32>
    %cst_9 = arith.constant 1.000000e+00 : f32
    %33 = vector.broadcast %cst_9 : f32 to vector<1x256xf32>
    %34 = arith.addf %33, %32 : vector<1x256xf32>
    %35 = arith.divf %33, %34 : vector<1x256xf32>
    %36 = vector.extract_strided_slice %35 {offsets = [0, 0], sizes = [1, 64], strides = [1, 1]} : vector<1x256xf32> to vector<1x64xf32>
    %37 = vector.extract_strided_slice %35 {offsets = [0, 64], sizes = [1, 64], strides = [1, 1]} : vector<1x256xf32> to vector<1x64xf32>
    %38 = vector.extract_strided_slice %30 {offsets = [0, 128], sizes = [1, 64], strides = [1, 1]} : vector<1x256xf32> to vector<1x64xf32>
    %39 = math.tanh %38 : vector<1x64xf32>
    %40 = vector.extract_strided_slice %35 {offsets = [0, 192], sizes = [1, 64], strides = [1, 1]} : vector<1x256xf32> to vector<1x64xf32>
    %41 = arith.mulf %37, %27 : vector<1x64xf32>
    %42 = arith.mulf %36, %39 : vector<1x64xf32>
    %43 = arith.addf %41, %42 : vector<1x64xf32>
    %44 = math.tanh %43 : vector<1x64xf32>
    %45 = arith.mulf %40, %44 : vector<1x64xf32>
    %46 = vector.extract_strided_slice %45 {offsets = [0, 0], sizes = [1, 32], strides = [1, 1]} : vector<1x64xf32> to vector<1x32xf32>
    %47 = vector.extract_strided_slice %6 {offsets = [2, 0], sizes = [1, 256], strides = [1, 1]} : vector<16x256xf32> to vector<1x256xf32>
    %cst_10 = arith.constant dense<0.000000e+00> : vector<1x256xf32>
    %48 = tpu.matmul %45, %0, %cst_10 {dimension_numbers = #tpu.dot_dimension_numbers<[1], [0], [0], [1], [0, 0, 1, 1], [], []>} : vector<1x64xf32>, vector<64x256xf32>, vector<1x256xf32> -> vector<1x256xf32>
    %49 = arith.addf %47, %48 : vector<1x256xf32>
    %50 = arith.negf %49 : vector<1x256xf32>
    %51 = math.exp %50 : vector<1x256xf32>
    %cst_11 = arith.constant 1.000000e+00 : f32
    %52 = vector.broadcast %cst_11 : f32 to vector<1x256xf32>
    %53 = arith.addf %52, %51 : vector<1x256xf32>
    %54 = arith.divf %52, %53 : vector<1x256xf32>
    %55 = vector.extract_strided_slice %54 {offsets = [0, 0], sizes = [1, 64], strides = [1, 1]} : vector<1x256xf32> to vector<1x64xf32>
    %56 = vector.extract_strided_slice %54 {offsets = [0, 64], sizes = [1, 64], strides = [1, 1]} : vector<1x256xf32> to vector<1x64xf32>
    %57 = vector.extract_strided_slice %49 {offsets = [0, 128], sizes = [1, 64], strides = [1, 1]} : vector<1x256xf32> to vector<1x64xf32>
    %58 = math.tanh %57 : vector<1x64xf32>
    %59 = vector.extract_strided_slice %54 {offsets = [0, 192], sizes = [1, 64], strides = [1, 1]} : vector<1x256xf32> to vector<1x64xf32>
    %60 = arith.mulf %56, %43 : vector<1x64xf32>
    %61 = arith.mulf %55, %58 : vector<1x64xf32>
    %62 = arith.addf %60, %61 : vector<1x64xf32>
    %63 = math.tanh %62 : vector<1x64xf32>
    %64 = arith.mulf %59, %63 : vector<1x64xf32>
    %65 = vector.extract_strided_slice %64 {offsets = [0, 0], sizes = [1, 32], strides = [1, 1]} : vector<1x64xf32> to vector<1x32xf32>
    %66 = vector.extract_strided_slice %6 {offsets = [3, 0], sizes = [1, 256], strides = [1, 1]} : vector<16x256xf32> to vector<1x256xf32>
    %cst_12 = arith.constant dense<0.000000e+00> : vector<1x256xf32>
    %67 = tpu.matmul %64, %0, %cst_12 {dimension_numbers = #tpu.dot_dimension_numbers<[1], [0], [0], [1], [0, 0, 1, 1], [], []>} : vector<1x64xf32>, vector<64x256xf32>, vector<1x256xf32> -> vector<1x256xf32>
    %68 = arith.addf %66, %67 : vector<1x256xf32>
    %69 = arith.negf %68 : vector<1x256xf32>
    %70 = math.exp %69 : vector<1x256xf32>
    %cst_13 = arith.constant 1.000000e+00 : f32
    %71 = vector.broadcast %cst_13 : f32 to vector<1x256xf32>
    %72 = arith.addf %71, %70 : vector<1x256xf32>
    %73 = arith.divf %71, %72 : vector<1x256xf32>
    %74 = vector.extract_strided_slice %73 {offsets = [0, 0], sizes = [1, 64], strides = [1, 1]} : vector<1x256xf32> to vector<1x64xf32>
    %75 = vector.extract_strided_slice %73 {offsets = [0, 64], sizes = [1, 64], strides = [1, 1]} : vector<1x256xf32> to vector<1x64xf32>
    %76 = vector.extract_strided_slice %68 {offsets = [0, 128], sizes = [1, 64], strides = [1, 1]} : vector<1x256xf32> to vector<1x64xf32>
    %77 = math.tanh %76 : vector<1x64xf32>
    %78 = vector.extract_strided_slice %73 {offsets = [0, 192], sizes = [1, 64], strides = [1, 1]} : vector<1x256xf32> to vector<1x64xf32>
    %79 = arith.mulf %75, %62 : vector<1x64xf32>
    %80 = arith.mulf %74, %77 : vector<1x64xf32>
    %81 = arith.addf %79, %80 : vector<1x64xf32>
    %82 = math.tanh %81 : vector<1x64xf32>
    %83 = arith.mulf %78, %82 : vector<1x64xf32>
    %84 = vector.extract_strided_slice %83 {offsets = [0, 0], sizes = [1, 32], strides = [1, 1]} : vector<1x64xf32> to vector<1x32xf32>
    %85 = vector.extract_strided_slice %6 {offsets = [4, 0], sizes = [1, 256], strides = [1, 1]} : vector<16x256xf32> to vector<1x256xf32>
    %cst_14 = arith.constant dense<0.000000e+00> : vector<1x256xf32>
    %86 = tpu.matmul %83, %0, %cst_14 {dimension_numbers = #tpu.dot_dimension_numbers<[1], [0], [0], [1], [0, 0, 1, 1], [], []>} : vector<1x64xf32>, vector<64x256xf32>, vector<1x256xf32> -> vector<1x256xf32>
    %87 = arith.addf %85, %86 : vector<1x256xf32>
    %88 = arith.negf %87 : vector<1x256xf32>
    %89 = math.exp %88 : vector<1x256xf32>
    %cst_15 = arith.constant 1.000000e+00 : f32
    %90 = vector.broadcast %cst_15 : f32 to vector<1x256xf32>
    %91 = arith.addf %90, %89 : vector<1x256xf32>
    %92 = arith.divf %90, %91 : vector<1x256xf32>
    %93 = vector.extract_strided_slice %92 {offsets = [0, 0], sizes = [1, 64], strides = [1, 1]} : vector<1x256xf32> to vector<1x64xf32>
    %94 = vector.extract_strided_slice %92 {offsets = [0, 64], sizes = [1, 64], strides = [1, 1]} : vector<1x256xf32> to vector<1x64xf32>
    %95 = vector.extract_strided_slice %87 {offsets = [0, 128], sizes = [1, 64], strides = [1, 1]} : vector<1x256xf32> to vector<1x64xf32>
    %96 = math.tanh %95 : vector<1x64xf32>
    %97 = vector.extract_strided_slice %92 {offsets = [0, 192], sizes = [1, 64], strides = [1, 1]} : vector<1x256xf32> to vector<1x64xf32>
    %98 = arith.mulf %94, %81 : vector<1x64xf32>
    %99 = arith.mulf %93, %96 : vector<1x64xf32>
    %100 = arith.addf %98, %99 : vector<1x64xf32>
    %101 = math.tanh %100 : vector<1x64xf32>
    %102 = arith.mulf %97, %101 : vector<1x64xf32>
    %103 = vector.extract_strided_slice %102 {offsets = [0, 0], sizes = [1, 32], strides = [1, 1]} : vector<1x64xf32> to vector<1x32xf32>
    %104 = vector.extract_strided_slice %6 {offsets = [5, 0], sizes = [1, 256], strides = [1, 1]} : vector<16x256xf32> to vector<1x256xf32>
    %cst_16 = arith.constant dense<0.000000e+00> : vector<1x256xf32>
    %105 = tpu.matmul %102, %0, %cst_16 {dimension_numbers = #tpu.dot_dimension_numbers<[1], [0], [0], [1], [0, 0, 1, 1], [], []>} : vector<1x64xf32>, vector<64x256xf32>, vector<1x256xf32> -> vector<1x256xf32>
    %106 = arith.addf %104, %105 : vector<1x256xf32>
    %107 = arith.negf %106 : vector<1x256xf32>
    %108 = math.exp %107 : vector<1x256xf32>
    %cst_17 = arith.constant 1.000000e+00 : f32
    %109 = vector.broadcast %cst_17 : f32 to vector<1x256xf32>
    %110 = arith.addf %109, %108 : vector<1x256xf32>
    %111 = arith.divf %109, %110 : vector<1x256xf32>
    %112 = vector.extract_strided_slice %111 {offsets = [0, 0], sizes = [1, 64], strides = [1, 1]} : vector<1x256xf32> to vector<1x64xf32>
    %113 = vector.extract_strided_slice %111 {offsets = [0, 64], sizes = [1, 64], strides = [1, 1]} : vector<1x256xf32> to vector<1x64xf32>
    %114 = vector.extract_strided_slice %106 {offsets = [0, 128], sizes = [1, 64], strides = [1, 1]} : vector<1x256xf32> to vector<1x64xf32>
    %115 = math.tanh %114 : vector<1x64xf32>
    %116 = vector.extract_strided_slice %111 {offsets = [0, 192], sizes = [1, 64], strides = [1, 1]} : vector<1x256xf32> to vector<1x64xf32>
    %117 = arith.mulf %113, %100 : vector<1x64xf32>
    %118 = arith.mulf %112, %115 : vector<1x64xf32>
    %119 = arith.addf %117, %118 : vector<1x64xf32>
    %120 = math.tanh %119 : vector<1x64xf32>
    %121 = arith.mulf %116, %120 : vector<1x64xf32>
    %122 = vector.extract_strided_slice %121 {offsets = [0, 0], sizes = [1, 32], strides = [1, 1]} : vector<1x64xf32> to vector<1x32xf32>
    %123 = vector.extract_strided_slice %6 {offsets = [6, 0], sizes = [1, 256], strides = [1, 1]} : vector<16x256xf32> to vector<1x256xf32>
    %cst_18 = arith.constant dense<0.000000e+00> : vector<1x256xf32>
    %124 = tpu.matmul %121, %0, %cst_18 {dimension_numbers = #tpu.dot_dimension_numbers<[1], [0], [0], [1], [0, 0, 1, 1], [], []>} : vector<1x64xf32>, vector<64x256xf32>, vector<1x256xf32> -> vector<1x256xf32>
    %125 = arith.addf %123, %124 : vector<1x256xf32>
    %126 = arith.negf %125 : vector<1x256xf32>
    %127 = math.exp %126 : vector<1x256xf32>
    %cst_19 = arith.constant 1.000000e+00 : f32
    %128 = vector.broadcast %cst_19 : f32 to vector<1x256xf32>
    %129 = arith.addf %128, %127 : vector<1x256xf32>
    %130 = arith.divf %128, %129 : vector<1x256xf32>
    %131 = vector.extract_strided_slice %130 {offsets = [0, 0], sizes = [1, 64], strides = [1, 1]} : vector<1x256xf32> to vector<1x64xf32>
    %132 = vector.extract_strided_slice %130 {offsets = [0, 64], sizes = [1, 64], strides = [1, 1]} : vector<1x256xf32> to vector<1x64xf32>
    %133 = vector.extract_strided_slice %125 {offsets = [0, 128], sizes = [1, 64], strides = [1, 1]} : vector<1x256xf32> to vector<1x64xf32>
    %134 = math.tanh %133 : vector<1x64xf32>
    %135 = vector.extract_strided_slice %130 {offsets = [0, 192], sizes = [1, 64], strides = [1, 1]} : vector<1x256xf32> to vector<1x64xf32>
    %136 = arith.mulf %132, %119 : vector<1x64xf32>
    %137 = arith.mulf %131, %134 : vector<1x64xf32>
    %138 = arith.addf %136, %137 : vector<1x64xf32>
    %139 = math.tanh %138 : vector<1x64xf32>
    %140 = arith.mulf %135, %139 : vector<1x64xf32>
    %141 = vector.extract_strided_slice %140 {offsets = [0, 0], sizes = [1, 32], strides = [1, 1]} : vector<1x64xf32> to vector<1x32xf32>
    %142 = vector.extract_strided_slice %6 {offsets = [7, 0], sizes = [1, 256], strides = [1, 1]} : vector<16x256xf32> to vector<1x256xf32>
    %cst_20 = arith.constant dense<0.000000e+00> : vector<1x256xf32>
    %143 = tpu.matmul %140, %0, %cst_20 {dimension_numbers = #tpu.dot_dimension_numbers<[1], [0], [0], [1], [0, 0, 1, 1], [], []>} : vector<1x64xf32>, vector<64x256xf32>, vector<1x256xf32> -> vector<1x256xf32>
    %144 = arith.addf %142, %143 : vector<1x256xf32>
    %145 = arith.negf %144 : vector<1x256xf32>
    %146 = math.exp %145 : vector<1x256xf32>
    %cst_21 = arith.constant 1.000000e+00 : f32
    %147 = vector.broadcast %cst_21 : f32 to vector<1x256xf32>
    %148 = arith.addf %147, %146 : vector<1x256xf32>
    %149 = arith.divf %147, %148 : vector<1x256xf32>
    %150 = vector.extract_strided_slice %149 {offsets = [0, 0], sizes = [1, 64], strides = [1, 1]} : vector<1x256xf32> to vector<1x64xf32>
    %151 = vector.extract_strided_slice %149 {offsets = [0, 64], sizes = [1, 64], strides = [1, 1]} : vector<1x256xf32> to vector<1x64xf32>
    %152 = vector.extract_strided_slice %144 {offsets = [0, 128], sizes = [1, 64], strides = [1, 1]} : vector<1x256xf32> to vector<1x64xf32>
    %153 = math.tanh %152 : vector<1x64xf32>
    %154 = vector.extract_strided_slice %149 {offsets = [0, 192], sizes = [1, 64], strides = [1, 1]} : vector<1x256xf32> to vector<1x64xf32>
    %155 = arith.mulf %151, %138 : vector<1x64xf32>
    %156 = arith.mulf %150, %153 : vector<1x64xf32>
    %157 = arith.addf %155, %156 : vector<1x64xf32>
    %158 = math.tanh %157 : vector<1x64xf32>
    %159 = arith.mulf %154, %158 : vector<1x64xf32>
    %160 = vector.extract_strided_slice %159 {offsets = [0, 0], sizes = [1, 32], strides = [1, 1]} : vector<1x64xf32> to vector<1x32xf32>
    %161 = vector.extract_strided_slice %6 {offsets = [8, 0], sizes = [1, 256], strides = [1, 1]} : vector<16x256xf32> to vector<1x256xf32>
    %cst_22 = arith.constant dense<0.000000e+00> : vector<1x256xf32>
    %162 = tpu.matmul %159, %0, %cst_22 {dimension_numbers = #tpu.dot_dimension_numbers<[1], [0], [0], [1], [0, 0, 1, 1], [], []>} : vector<1x64xf32>, vector<64x256xf32>, vector<1x256xf32> -> vector<1x256xf32>
    %163 = arith.addf %161, %162 : vector<1x256xf32>
    %164 = arith.negf %163 : vector<1x256xf32>
    %165 = math.exp %164 : vector<1x256xf32>
    %cst_23 = arith.constant 1.000000e+00 : f32
    %166 = vector.broadcast %cst_23 : f32 to vector<1x256xf32>
    %167 = arith.addf %166, %165 : vector<1x256xf32>
    %168 = arith.divf %166, %167 : vector<1x256xf32>
    %169 = vector.extract_strided_slice %168 {offsets = [0, 0], sizes = [1, 64], strides = [1, 1]} : vector<1x256xf32> to vector<1x64xf32>
    %170 = vector.extract_strided_slice %168 {offsets = [0, 64], sizes = [1, 64], strides = [1, 1]} : vector<1x256xf32> to vector<1x64xf32>
    %171 = vector.extract_strided_slice %163 {offsets = [0, 128], sizes = [1, 64], strides = [1, 1]} : vector<1x256xf32> to vector<1x64xf32>
    %172 = math.tanh %171 : vector<1x64xf32>
    %173 = vector.extract_strided_slice %168 {offsets = [0, 192], sizes = [1, 64], strides = [1, 1]} : vector<1x256xf32> to vector<1x64xf32>
    %174 = arith.mulf %170, %157 : vector<1x64xf32>
    %175 = arith.mulf %169, %172 : vector<1x64xf32>
    %176 = arith.addf %174, %175 : vector<1x64xf32>
    %177 = math.tanh %176 : vector<1x64xf32>
    %178 = arith.mulf %173, %177 : vector<1x64xf32>
    %179 = vector.extract_strided_slice %178 {offsets = [0, 0], sizes = [1, 32], strides = [1, 1]} : vector<1x64xf32> to vector<1x32xf32>
    %180 = vector.extract_strided_slice %6 {offsets = [9, 0], sizes = [1, 256], strides = [1, 1]} : vector<16x256xf32> to vector<1x256xf32>
    %cst_24 = arith.constant dense<0.000000e+00> : vector<1x256xf32>
    %181 = tpu.matmul %178, %0, %cst_24 {dimension_numbers = #tpu.dot_dimension_numbers<[1], [0], [0], [1], [0, 0, 1, 1], [], []>} : vector<1x64xf32>, vector<64x256xf32>, vector<1x256xf32> -> vector<1x256xf32>
    %182 = arith.addf %180, %181 : vector<1x256xf32>
    %183 = arith.negf %182 : vector<1x256xf32>
    %184 = math.exp %183 : vector<1x256xf32>
    %cst_25 = arith.constant 1.000000e+00 : f32
    %185 = vector.broadcast %cst_25 : f32 to vector<1x256xf32>
    %186 = arith.addf %185, %184 : vector<1x256xf32>
    %187 = arith.divf %185, %186 : vector<1x256xf32>
    %188 = vector.extract_strided_slice %187 {offsets = [0, 0], sizes = [1, 64], strides = [1, 1]} : vector<1x256xf32> to vector<1x64xf32>
    %189 = vector.extract_strided_slice %187 {offsets = [0, 64], sizes = [1, 64], strides = [1, 1]} : vector<1x256xf32> to vector<1x64xf32>
    %190 = vector.extract_strided_slice %182 {offsets = [0, 128], sizes = [1, 64], strides = [1, 1]} : vector<1x256xf32> to vector<1x64xf32>
    %191 = math.tanh %190 : vector<1x64xf32>
    %192 = vector.extract_strided_slice %187 {offsets = [0, 192], sizes = [1, 64], strides = [1, 1]} : vector<1x256xf32> to vector<1x64xf32>
    %193 = arith.mulf %189, %176 : vector<1x64xf32>
    %194 = arith.mulf %188, %191 : vector<1x64xf32>
    %195 = arith.addf %193, %194 : vector<1x64xf32>
    %196 = math.tanh %195 : vector<1x64xf32>
    %197 = arith.mulf %192, %196 : vector<1x64xf32>
    %198 = vector.extract_strided_slice %197 {offsets = [0, 0], sizes = [1, 32], strides = [1, 1]} : vector<1x64xf32> to vector<1x32xf32>
    %199 = vector.extract_strided_slice %6 {offsets = [10, 0], sizes = [1, 256], strides = [1, 1]} : vector<16x256xf32> to vector<1x256xf32>
    %cst_26 = arith.constant dense<0.000000e+00> : vector<1x256xf32>
    %200 = tpu.matmul %197, %0, %cst_26 {dimension_numbers = #tpu.dot_dimension_numbers<[1], [0], [0], [1], [0, 0, 1, 1], [], []>} : vector<1x64xf32>, vector<64x256xf32>, vector<1x256xf32> -> vector<1x256xf32>
    %201 = arith.addf %199, %200 : vector<1x256xf32>
    %202 = arith.negf %201 : vector<1x256xf32>
    %203 = math.exp %202 : vector<1x256xf32>
    %cst_27 = arith.constant 1.000000e+00 : f32
    %204 = vector.broadcast %cst_27 : f32 to vector<1x256xf32>
    %205 = arith.addf %204, %203 : vector<1x256xf32>
    %206 = arith.divf %204, %205 : vector<1x256xf32>
    %207 = vector.extract_strided_slice %206 {offsets = [0, 0], sizes = [1, 64], strides = [1, 1]} : vector<1x256xf32> to vector<1x64xf32>
    %208 = vector.extract_strided_slice %206 {offsets = [0, 64], sizes = [1, 64], strides = [1, 1]} : vector<1x256xf32> to vector<1x64xf32>
    %209 = vector.extract_strided_slice %201 {offsets = [0, 128], sizes = [1, 64], strides = [1, 1]} : vector<1x256xf32> to vector<1x64xf32>
    %210 = math.tanh %209 : vector<1x64xf32>
    %211 = vector.extract_strided_slice %206 {offsets = [0, 192], sizes = [1, 64], strides = [1, 1]} : vector<1x256xf32> to vector<1x64xf32>
    %212 = arith.mulf %208, %195 : vector<1x64xf32>
    %213 = arith.mulf %207, %210 : vector<1x64xf32>
    %214 = arith.addf %212, %213 : vector<1x64xf32>
    %215 = math.tanh %214 : vector<1x64xf32>
    %216 = arith.mulf %211, %215 : vector<1x64xf32>
    %217 = vector.extract_strided_slice %216 {offsets = [0, 0], sizes = [1, 32], strides = [1, 1]} : vector<1x64xf32> to vector<1x32xf32>
    %218 = vector.extract_strided_slice %6 {offsets = [11, 0], sizes = [1, 256], strides = [1, 1]} : vector<16x256xf32> to vector<1x256xf32>
    %cst_28 = arith.constant dense<0.000000e+00> : vector<1x256xf32>
    %219 = tpu.matmul %216, %0, %cst_28 {dimension_numbers = #tpu.dot_dimension_numbers<[1], [0], [0], [1], [0, 0, 1, 1], [], []>} : vector<1x64xf32>, vector<64x256xf32>, vector<1x256xf32> -> vector<1x256xf32>
    %220 = arith.addf %218, %219 : vector<1x256xf32>
    %221 = arith.negf %220 : vector<1x256xf32>
    %222 = math.exp %221 : vector<1x256xf32>
    %cst_29 = arith.constant 1.000000e+00 : f32
    %223 = vector.broadcast %cst_29 : f32 to vector<1x256xf32>
    %224 = arith.addf %223, %222 : vector<1x256xf32>
    %225 = arith.divf %223, %224 : vector<1x256xf32>
    %226 = vector.extract_strided_slice %225 {offsets = [0, 0], sizes = [1, 64], strides = [1, 1]} : vector<1x256xf32> to vector<1x64xf32>
    %227 = vector.extract_strided_slice %225 {offsets = [0, 64], sizes = [1, 64], strides = [1, 1]} : vector<1x256xf32> to vector<1x64xf32>
    %228 = vector.extract_strided_slice %220 {offsets = [0, 128], sizes = [1, 64], strides = [1, 1]} : vector<1x256xf32> to vector<1x64xf32>
    %229 = math.tanh %228 : vector<1x64xf32>
    %230 = vector.extract_strided_slice %225 {offsets = [0, 192], sizes = [1, 64], strides = [1, 1]} : vector<1x256xf32> to vector<1x64xf32>
    %231 = arith.mulf %227, %214 : vector<1x64xf32>
    %232 = arith.mulf %226, %229 : vector<1x64xf32>
    %233 = arith.addf %231, %232 : vector<1x64xf32>
    %234 = math.tanh %233 : vector<1x64xf32>
    %235 = arith.mulf %230, %234 : vector<1x64xf32>
    %236 = vector.extract_strided_slice %235 {offsets = [0, 0], sizes = [1, 32], strides = [1, 1]} : vector<1x64xf32> to vector<1x32xf32>
    %237 = vector.extract_strided_slice %6 {offsets = [12, 0], sizes = [1, 256], strides = [1, 1]} : vector<16x256xf32> to vector<1x256xf32>
    %cst_30 = arith.constant dense<0.000000e+00> : vector<1x256xf32>
    %238 = tpu.matmul %235, %0, %cst_30 {dimension_numbers = #tpu.dot_dimension_numbers<[1], [0], [0], [1], [0, 0, 1, 1], [], []>} : vector<1x64xf32>, vector<64x256xf32>, vector<1x256xf32> -> vector<1x256xf32>
    %239 = arith.addf %237, %238 : vector<1x256xf32>
    %240 = arith.negf %239 : vector<1x256xf32>
    %241 = math.exp %240 : vector<1x256xf32>
    %cst_31 = arith.constant 1.000000e+00 : f32
    %242 = vector.broadcast %cst_31 : f32 to vector<1x256xf32>
    %243 = arith.addf %242, %241 : vector<1x256xf32>
    %244 = arith.divf %242, %243 : vector<1x256xf32>
    %245 = vector.extract_strided_slice %244 {offsets = [0, 0], sizes = [1, 64], strides = [1, 1]} : vector<1x256xf32> to vector<1x64xf32>
    %246 = vector.extract_strided_slice %244 {offsets = [0, 64], sizes = [1, 64], strides = [1, 1]} : vector<1x256xf32> to vector<1x64xf32>
    %247 = vector.extract_strided_slice %239 {offsets = [0, 128], sizes = [1, 64], strides = [1, 1]} : vector<1x256xf32> to vector<1x64xf32>
    %248 = math.tanh %247 : vector<1x64xf32>
    %249 = vector.extract_strided_slice %244 {offsets = [0, 192], sizes = [1, 64], strides = [1, 1]} : vector<1x256xf32> to vector<1x64xf32>
    %250 = arith.mulf %246, %233 : vector<1x64xf32>
    %251 = arith.mulf %245, %248 : vector<1x64xf32>
    %252 = arith.addf %250, %251 : vector<1x64xf32>
    %253 = math.tanh %252 : vector<1x64xf32>
    %254 = arith.mulf %249, %253 : vector<1x64xf32>
    %255 = vector.extract_strided_slice %254 {offsets = [0, 0], sizes = [1, 32], strides = [1, 1]} : vector<1x64xf32> to vector<1x32xf32>
    %256 = vector.extract_strided_slice %6 {offsets = [13, 0], sizes = [1, 256], strides = [1, 1]} : vector<16x256xf32> to vector<1x256xf32>
    %cst_32 = arith.constant dense<0.000000e+00> : vector<1x256xf32>
    %257 = tpu.matmul %254, %0, %cst_32 {dimension_numbers = #tpu.dot_dimension_numbers<[1], [0], [0], [1], [0, 0, 1, 1], [], []>} : vector<1x64xf32>, vector<64x256xf32>, vector<1x256xf32> -> vector<1x256xf32>
    %258 = arith.addf %256, %257 : vector<1x256xf32>
    %259 = arith.negf %258 : vector<1x256xf32>
    %260 = math.exp %259 : vector<1x256xf32>
    %cst_33 = arith.constant 1.000000e+00 : f32
    %261 = vector.broadcast %cst_33 : f32 to vector<1x256xf32>
    %262 = arith.addf %261, %260 : vector<1x256xf32>
    %263 = arith.divf %261, %262 : vector<1x256xf32>
    %264 = vector.extract_strided_slice %263 {offsets = [0, 0], sizes = [1, 64], strides = [1, 1]} : vector<1x256xf32> to vector<1x64xf32>
    %265 = vector.extract_strided_slice %263 {offsets = [0, 64], sizes = [1, 64], strides = [1, 1]} : vector<1x256xf32> to vector<1x64xf32>
    %266 = vector.extract_strided_slice %258 {offsets = [0, 128], sizes = [1, 64], strides = [1, 1]} : vector<1x256xf32> to vector<1x64xf32>
    %267 = math.tanh %266 : vector<1x64xf32>
    %268 = vector.extract_strided_slice %263 {offsets = [0, 192], sizes = [1, 64], strides = [1, 1]} : vector<1x256xf32> to vector<1x64xf32>
    %269 = arith.mulf %265, %252 : vector<1x64xf32>
    %270 = arith.mulf %264, %267 : vector<1x64xf32>
    %271 = arith.addf %269, %270 : vector<1x64xf32>
    %272 = math.tanh %271 : vector<1x64xf32>
    %273 = arith.mulf %268, %272 : vector<1x64xf32>
    %274 = vector.extract_strided_slice %273 {offsets = [0, 0], sizes = [1, 32], strides = [1, 1]} : vector<1x64xf32> to vector<1x32xf32>
    %275 = vector.extract_strided_slice %6 {offsets = [14, 0], sizes = [1, 256], strides = [1, 1]} : vector<16x256xf32> to vector<1x256xf32>
    %cst_34 = arith.constant dense<0.000000e+00> : vector<1x256xf32>
    %276 = tpu.matmul %273, %0, %cst_34 {dimension_numbers = #tpu.dot_dimension_numbers<[1], [0], [0], [1], [0, 0, 1, 1], [], []>} : vector<1x64xf32>, vector<64x256xf32>, vector<1x256xf32> -> vector<1x256xf32>
    %277 = arith.addf %275, %276 : vector<1x256xf32>
    %278 = arith.negf %277 : vector<1x256xf32>
    %279 = math.exp %278 : vector<1x256xf32>
    %cst_35 = arith.constant 1.000000e+00 : f32
    %280 = vector.broadcast %cst_35 : f32 to vector<1x256xf32>
    %281 = arith.addf %280, %279 : vector<1x256xf32>
    %282 = arith.divf %280, %281 : vector<1x256xf32>
    %283 = vector.extract_strided_slice %282 {offsets = [0, 0], sizes = [1, 64], strides = [1, 1]} : vector<1x256xf32> to vector<1x64xf32>
    %284 = vector.extract_strided_slice %282 {offsets = [0, 64], sizes = [1, 64], strides = [1, 1]} : vector<1x256xf32> to vector<1x64xf32>
    %285 = vector.extract_strided_slice %277 {offsets = [0, 128], sizes = [1, 64], strides = [1, 1]} : vector<1x256xf32> to vector<1x64xf32>
    %286 = math.tanh %285 : vector<1x64xf32>
    %287 = vector.extract_strided_slice %282 {offsets = [0, 192], sizes = [1, 64], strides = [1, 1]} : vector<1x256xf32> to vector<1x64xf32>
    %288 = arith.mulf %284, %271 : vector<1x64xf32>
    %289 = arith.mulf %283, %286 : vector<1x64xf32>
    %290 = arith.addf %288, %289 : vector<1x64xf32>
    %291 = math.tanh %290 : vector<1x64xf32>
    %292 = arith.mulf %287, %291 : vector<1x64xf32>
    %293 = vector.extract_strided_slice %292 {offsets = [0, 0], sizes = [1, 32], strides = [1, 1]} : vector<1x64xf32> to vector<1x32xf32>
    %294 = vector.extract_strided_slice %6 {offsets = [15, 0], sizes = [1, 256], strides = [1, 1]} : vector<16x256xf32> to vector<1x256xf32>
    %cst_36 = arith.constant dense<0.000000e+00> : vector<1x256xf32>
    %295 = tpu.matmul %292, %0, %cst_36 {dimension_numbers = #tpu.dot_dimension_numbers<[1], [0], [0], [1], [0, 0, 1, 1], [], []>} : vector<1x64xf32>, vector<64x256xf32>, vector<1x256xf32> -> vector<1x256xf32>
    %296 = arith.addf %294, %295 : vector<1x256xf32>
    %297 = arith.negf %296 : vector<1x256xf32>
    %298 = math.exp %297 : vector<1x256xf32>
    %cst_37 = arith.constant 1.000000e+00 : f32
    %299 = vector.broadcast %cst_37 : f32 to vector<1x256xf32>
    %300 = arith.addf %299, %298 : vector<1x256xf32>
    %301 = arith.divf %299, %300 : vector<1x256xf32>
    %302 = vector.extract_strided_slice %301 {offsets = [0, 0], sizes = [1, 64], strides = [1, 1]} : vector<1x256xf32> to vector<1x64xf32>
    %303 = vector.extract_strided_slice %301 {offsets = [0, 64], sizes = [1, 64], strides = [1, 1]} : vector<1x256xf32> to vector<1x64xf32>
    %304 = vector.extract_strided_slice %296 {offsets = [0, 128], sizes = [1, 64], strides = [1, 1]} : vector<1x256xf32> to vector<1x64xf32>
    %305 = math.tanh %304 : vector<1x64xf32>
    %306 = vector.extract_strided_slice %301 {offsets = [0, 192], sizes = [1, 64], strides = [1, 1]} : vector<1x256xf32> to vector<1x64xf32>
    %307 = arith.mulf %303, %290 : vector<1x64xf32>
    %308 = arith.mulf %302, %305 : vector<1x64xf32>
    %309 = arith.addf %307, %308 : vector<1x64xf32>
    %310 = math.tanh %309 : vector<1x64xf32>
    %311 = arith.mulf %306, %310 : vector<1x64xf32>
    %312 = vector.extract_strided_slice %311 {offsets = [0, 0], sizes = [1, 32], strides = [1, 1]} : vector<1x64xf32> to vector<1x32xf32>
    %cst_38 = arith.constant dense<0.000000e+00> : vector<1x256xf32>
    %313 = tpu.matmul %311, %0, %cst_38 {dimension_numbers = #tpu.dot_dimension_numbers<[1], [0], [0], [1], [0, 0, 1, 1], [], []>} : vector<1x64xf32>, vector<64x256xf32>, vector<1x256xf32> -> vector<1x256xf32>
    %314 = arith.addf %1, %313 : vector<1x256xf32>
    %315 = arith.negf %314 : vector<1x256xf32>
    %316 = math.exp %315 : vector<1x256xf32>
    %cst_39 = arith.constant 1.000000e+00 : f32
    %317 = vector.broadcast %cst_39 : f32 to vector<1x256xf32>
    %318 = arith.addf %317, %316 : vector<1x256xf32>
    %319 = arith.divf %317, %318 : vector<1x256xf32>
    %320 = vector.extract_strided_slice %319 {offsets = [0, 0], sizes = [1, 64], strides = [1, 1]} : vector<1x256xf32> to vector<1x64xf32>
    %321 = vector.extract_strided_slice %319 {offsets = [0, 64], sizes = [1, 64], strides = [1, 1]} : vector<1x256xf32> to vector<1x64xf32>
    %322 = vector.extract_strided_slice %314 {offsets = [0, 128], sizes = [1, 64], strides = [1, 1]} : vector<1x256xf32> to vector<1x64xf32>
    %323 = math.tanh %322 : vector<1x64xf32>
    %324 = vector.extract_strided_slice %319 {offsets = [0, 192], sizes = [1, 64], strides = [1, 1]} : vector<1x256xf32> to vector<1x64xf32>
    %325 = arith.mulf %321, %309 : vector<1x64xf32>
    %326 = arith.mulf %320, %323 : vector<1x64xf32>
    %327 = arith.addf %325, %326 : vector<1x64xf32>
    %328 = math.tanh %327 : vector<1x64xf32>
    %329 = arith.mulf %324, %328 : vector<1x64xf32>
    %330 = vector.extract_strided_slice %329 {offsets = [0, 0], sizes = [1, 32], strides = [1, 1]} : vector<1x64xf32> to vector<1x32xf32>
    %331 = tpu.concatenate %46, %65, %84, %103, %122, %141, %160, %179, %198, %217, %236, %255, %274, %293, %312, %330 in 0 : vector<1x32xf32>, vector<1x32xf32>, vector<1x32xf32>, vector<1x32xf32>, vector<1x32xf32>, vector<1x32xf32>, vector<1x32xf32>, vector<1x32xf32>, vector<1x32xf32>, vector<1x32xf32>, vector<1x32xf32>, vector<1x32xf32>, vector<1x32xf32>, vector<1x32xf32>, vector<1x32xf32>, vector<1x32xf32> -> vector<16x32xf32>
    %c0_40 = arith.constant 0 : index
    %c0_41 = arith.constant 0 : index
    %332 = vector.load %arg2[%c0_40, %c0_41] : memref<70x32xf32, #tpu.memory_space<vmem>>, vector<32x16xf32>
    %cst_42 = arith.constant dense<0.000000e+00> : vector<16x16xf32>
    %333 = tpu.matmul %331, %332, %cst_42 {dimension_numbers = #tpu.dot_dimension_numbers<[1], [0], [0], [1], [0, 0, 1, 1], [], []>} : vector<16x32xf32>, vector<32x16xf32>, vector<16x16xf32> -> vector<16x16xf32>
    %c32 = arith.constant 32 : index
    %c0_43 = arith.constant 0 : index
    %334 = vector.load %arg2[%c32, %c0_43] : memref<70x32xf32, #tpu.memory_space<vmem>>, vector<1x16xf32>
    %335 = vector.broadcast %334 : vector<1x16xf32> to vector<16x16xf32>
    %336 = arith.addf %333, %335 : vector<16x16xf32>
    %cst_44 = arith.constant 0.000000e+00 : f32
    %337 = vector.broadcast %cst_44 : f32 to vector<16x16xf32>
    %338 = arith.cmpf ogt, %336, %337 : vector<16x16xf32>
    %cst_45 = arith.constant 0.00999999977 : f32
    %339 = vector.broadcast %cst_45 : f32 to vector<16x16xf32>
    %340 = arith.mulf %339, %336 : vector<16x16xf32>
    %341 = arith.select %338, %336, %340 : vector<16x16xi1>, vector<16x16xf32>
    %cst_46 = arith.constant dense<0.000000e+00> : vector<16xf32>
    %342 = vector.multi_reduction <add>, %341, %cst_46 [0] : vector<16x16xf32> to vector<16xf32>
    %343 = vector.shape_cast %342 : vector<16xf32> to vector<1x16xf32>
    %cst_47 = arith.constant 1.600000e+01 : f32
    %344 = vector.broadcast %cst_47 : f32 to vector<1x16xf32>
    %345 = arith.divf %343, %344 : vector<1x16xf32>
    %346 = vector.broadcast %345 : vector<1x16xf32> to vector<16x16xf32>
    %347 = arith.subf %341, %346 : vector<16x16xf32>
    %348 = arith.mulf %347, %347 : vector<16x16xf32>
    %cst_48 = arith.constant dense<0.000000e+00> : vector<16xf32>
    %349 = vector.multi_reduction <add>, %348, %cst_48 [0] : vector<16x16xf32> to vector<16xf32>
    %350 = vector.shape_cast %349 : vector<16xf32> to vector<1x16xf32>
    %cst_49 = arith.constant 1.600000e+01 : f32
    %351 = vector.broadcast %cst_49 : f32 to vector<1x16xf32>
    %352 = arith.divf %350, %351 : vector<1x16xf32>
    %353 = vector.broadcast %345 : vector<1x16xf32> to vector<16x16xf32>
    %354 = arith.subf %341, %353 : vector<16x16xf32>
    %cst_50 = arith.constant 9.99999974E-6 : f32
    %355 = vector.broadcast %cst_50 : f32 to vector<1x16xf32>
    %356 = arith.addf %352, %355 : vector<1x16xf32>
    %357 = math.rsqrt %356 : vector<1x16xf32>
    %358 = vector.broadcast %357 : vector<1x16xf32> to vector<16x16xf32>
    %359 = arith.mulf %354, %358 : vector<16x16xf32>
    %c33 = arith.constant 33 : index
    %c0_51 = arith.constant 0 : index
    %360 = vector.load %arg2[%c33, %c0_51] : memref<70x32xf32, #tpu.memory_space<vmem>>, vector<1x16xf32>
    %361 = vector.broadcast %360 : vector<1x16xf32> to vector<16x16xf32>
    %362 = arith.mulf %359, %361 : vector<16x16xf32>
    %c34 = arith.constant 34 : index
    %c0_52 = arith.constant 0 : index
    %363 = vector.load %arg2[%c34, %c0_52] : memref<70x32xf32, #tpu.memory_space<vmem>>, vector<1x16xf32>
    %364 = vector.broadcast %363 : vector<1x16xf32> to vector<16x16xf32>
    %365 = arith.addf %362, %364 : vector<16x16xf32>
    %c35 = arith.constant 35 : index
    %c0_53 = arith.constant 0 : index
    %366 = vector.load %arg2[%c35, %c0_53] : memref<70x32xf32, #tpu.memory_space<vmem>>, vector<16x8xf32>
    %cst_54 = arith.constant dense<0.000000e+00> : vector<16x8xf32>
    %367 = tpu.matmul %365, %366, %cst_54 {dimension_numbers = #tpu.dot_dimension_numbers<[1], [0], [0], [1], [0, 0, 1, 1], [], []>} : vector<16x16xf32>, vector<16x8xf32>, vector<16x8xf32> -> vector<16x8xf32>
    %c51 = arith.constant 51 : index
    %c0_55 = arith.constant 0 : index
    %368 = vector.load %arg2[%c51, %c0_55] : memref<70x32xf32, #tpu.memory_space<vmem>>, vector<1x8xf32>
    %369 = vector.broadcast %368 : vector<1x8xf32> to vector<16x8xf32>
    %370 = arith.addf %367, %369 : vector<16x8xf32>
    %cst_56 = arith.constant 0.000000e+00 : f32
    %371 = vector.broadcast %cst_56 : f32 to vector<16x8xf32>
    %372 = arith.cmpf ogt, %370, %371 : vector<16x8xf32>
    %cst_57 = arith.constant 0.00999999977 : f32
    %373 = vector.broadcast %cst_57 : f32 to vector<16x8xf32>
    %374 = arith.mulf %373, %370 : vector<16x8xf32>
    %375 = arith.select %372, %370, %374 : vector<16x8xi1>, vector<16x8xf32>
    %cst_58 = arith.constant dense<0.000000e+00> : vector<8xf32>
    %376 = vector.multi_reduction <add>, %375, %cst_58 [0] : vector<16x8xf32> to vector<8xf32>
    %377 = vector.shape_cast %376 : vector<8xf32> to vector<1x8xf32>
    %cst_59 = arith.constant 1.600000e+01 : f32
    %378 = vector.broadcast %cst_59 : f32 to vector<1x8xf32>
    %379 = arith.divf %377, %378 : vector<1x8xf32>
    %380 = vector.broadcast %379 : vector<1x8xf32> to vector<16x8xf32>
    %381 = arith.subf %375, %380 : vector<16x8xf32>
    %382 = arith.mulf %381, %381 : vector<16x8xf32>
    %cst_60 = arith.constant dense<0.000000e+00> : vector<8xf32>
    %383 = vector.multi_reduction <add>, %382, %cst_60 [0] : vector<16x8xf32> to vector<8xf32>
    %384 = vector.shape_cast %383 : vector<8xf32> to vector<1x8xf32>
    %cst_61 = arith.constant 1.600000e+01 : f32
    %385 = vector.broadcast %cst_61 : f32 to vector<1x8xf32>
    %386 = arith.divf %384, %385 : vector<1x8xf32>
    %387 = vector.broadcast %379 : vector<1x8xf32> to vector<16x8xf32>
    %388 = arith.subf %375, %387 : vector<16x8xf32>
    %cst_62 = arith.constant 9.99999974E-6 : f32
    %389 = vector.broadcast %cst_62 : f32 to vector<1x8xf32>
    %390 = arith.addf %386, %389 : vector<1x8xf32>
    %391 = math.rsqrt %390 : vector<1x8xf32>
    %392 = vector.broadcast %391 : vector<1x8xf32> to vector<16x8xf32>
    %393 = arith.mulf %388, %392 : vector<16x8xf32>
    %c52 = arith.constant 52 : index
    %c0_63 = arith.constant 0 : index
    %394 = vector.load %arg2[%c52, %c0_63] : memref<70x32xf32, #tpu.memory_space<vmem>>, vector<1x8xf32>
    %395 = vector.broadcast %394 : vector<1x8xf32> to vector<16x8xf32>
    %396 = arith.mulf %393, %395 : vector<16x8xf32>
    %c53 = arith.constant 53 : index
    %c0_64 = arith.constant 0 : index
    %397 = vector.load %arg2[%c53, %c0_64] : memref<70x32xf32, #tpu.memory_space<vmem>>, vector<1x8xf32>
    %398 = vector.broadcast %397 : vector<1x8xf32> to vector<16x8xf32>
    %399 = arith.addf %396, %398 : vector<16x8xf32>
    %c54 = arith.constant 54 : index
    %c0_65 = arith.constant 0 : index
    %400 = vector.load %arg2[%c54, %c0_65] : memref<70x32xf32, #tpu.memory_space<vmem>>, vector<8x4xf32>
    %cst_66 = arith.constant dense<0.000000e+00> : vector<16x4xf32>
    %401 = tpu.matmul %399, %400, %cst_66 {dimension_numbers = #tpu.dot_dimension_numbers<[1], [0], [0], [1], [0, 0, 1, 1], [], []>} : vector<16x8xf32>, vector<8x4xf32>, vector<16x4xf32> -> vector<16x4xf32>
    %c62 = arith.constant 62 : index
    %c0_67 = arith.constant 0 : index
    %402 = vector.load %arg2[%c62, %c0_67] : memref<70x32xf32, #tpu.memory_space<vmem>>, vector<1x4xf32>
    %403 = vector.broadcast %402 : vector<1x4xf32> to vector<16x4xf32>
    %404 = arith.addf %401, %403 : vector<16x4xf32>
    %cst_68 = arith.constant 0.000000e+00 : f32
    %405 = vector.broadcast %cst_68 : f32 to vector<16x4xf32>
    %406 = arith.cmpf ogt, %404, %405 : vector<16x4xf32>
    %cst_69 = arith.constant 0.00999999977 : f32
    %407 = vector.broadcast %cst_69 : f32 to vector<16x4xf32>
    %408 = arith.mulf %407, %404 : vector<16x4xf32>
    %409 = arith.select %406, %404, %408 : vector<16x4xi1>, vector<16x4xf32>
    %cst_70 = arith.constant dense<0.000000e+00> : vector<4xf32>
    %410 = vector.multi_reduction <add>, %409, %cst_70 [0] : vector<16x4xf32> to vector<4xf32>
    %411 = vector.shape_cast %410 : vector<4xf32> to vector<1x4xf32>
    %cst_71 = arith.constant 1.600000e+01 : f32
    %412 = vector.broadcast %cst_71 : f32 to vector<1x4xf32>
    %413 = arith.divf %411, %412 : vector<1x4xf32>
    %414 = vector.broadcast %413 : vector<1x4xf32> to vector<16x4xf32>
    %415 = arith.subf %409, %414 : vector<16x4xf32>
    %416 = arith.mulf %415, %415 : vector<16x4xf32>
    %cst_72 = arith.constant dense<0.000000e+00> : vector<4xf32>
    %417 = vector.multi_reduction <add>, %416, %cst_72 [0] : vector<16x4xf32> to vector<4xf32>
    %418 = vector.shape_cast %417 : vector<4xf32> to vector<1x4xf32>
    %cst_73 = arith.constant 1.600000e+01 : f32
    %419 = vector.broadcast %cst_73 : f32 to vector<1x4xf32>
    %420 = arith.divf %418, %419 : vector<1x4xf32>
    %421 = vector.broadcast %413 : vector<1x4xf32> to vector<16x4xf32>
    %422 = arith.subf %409, %421 : vector<16x4xf32>
    %cst_74 = arith.constant 9.99999974E-6 : f32
    %423 = vector.broadcast %cst_74 : f32 to vector<1x4xf32>
    %424 = arith.addf %420, %423 : vector<1x4xf32>
    %425 = math.rsqrt %424 : vector<1x4xf32>
    %426 = vector.broadcast %425 : vector<1x4xf32> to vector<16x4xf32>
    %427 = arith.mulf %422, %426 : vector<16x4xf32>
    %c63 = arith.constant 63 : index
    %c0_75 = arith.constant 0 : index
    %428 = vector.load %arg2[%c63, %c0_75] : memref<70x32xf32, #tpu.memory_space<vmem>>, vector<1x4xf32>
    %429 = vector.broadcast %428 : vector<1x4xf32> to vector<16x4xf32>
    %430 = arith.mulf %427, %429 : vector<16x4xf32>
    %c64 = arith.constant 64 : index
    %c0_76 = arith.constant 0 : index
    %431 = vector.load %arg2[%c64, %c0_76] : memref<70x32xf32, #tpu.memory_space<vmem>>, vector<1x4xf32>
    %432 = vector.broadcast %431 : vector<1x4xf32> to vector<16x4xf32>
    %433 = arith.addf %430, %432 : vector<16x4xf32>
    %c65 = arith.constant 65 : index
    %c0_77 = arith.constant 0 : index
    %434 = vector.load %arg2[%c65, %c0_77] : memref<70x32xf32, #tpu.memory_space<vmem>>, vector<4x2xf32>
    %cst_78 = arith.constant dense<0.000000e+00> : vector<16x2xf32>
    %435 = tpu.matmul %433, %434, %cst_78 {dimension_numbers = #tpu.dot_dimension_numbers<[1], [0], [0], [1], [0, 0, 1, 1], [], []>} : vector<16x4xf32>, vector<4x2xf32>, vector<16x2xf32> -> vector<16x2xf32>
    %c69 = arith.constant 69 : index
    %c0_79 = arith.constant 0 : index
    %436 = vector.load %arg2[%c69, %c0_79] : memref<70x32xf32, #tpu.memory_space<vmem>>, vector<1x2xf32>
    %437 = vector.broadcast %436 : vector<1x2xf32> to vector<16x2xf32>
    %438 = arith.addf %435, %437 : vector<16x2xf32>
    %c0_80 = arith.constant 0 : index
    %c0_81 = arith.constant 0 : index
    %439 = vector.load %arg3[%c0_80, %c0_81] : memref<16x2xf32, #tpu.memory_space<vmem>>, vector<16x2xf32>
    tpu.vector_store %arg3[%c0_80, %c0_81], %438 {strides = array<i32>} : memref<16x2xf32, #tpu.memory_space<vmem>>, vector<16x2xf32>,
    return
  }
}

</mosaic_0001>

<llo_original>
// kernel: lstm_forward.1
$region0: #{lstm_forward.1}
  #allocation0 [shape = 'u32[]', space=smem, size = 0x4, offset = 0x4, fixed_abs, tag = 'smem constant byte address 0x4 - core index']
  #allocation1 [shape = 'u32[144,128]{1,0:T(1,128)}', space=vmem, size = 0x12000, scoped, tag = 'internal scratch']
  %s0 = inlined_call_operand.vmem [shape: f32[16,8], index: 0, kind: input, shape index: {}]
  %s1 = inlined_call_operand.vmem [shape: f32[73,256], index: 1, kind: input, shape index: {}]
  %s2 = inlined_call_operand.vmem [shape: f32[70,32], index: 2, kind: input, shape index: {}]
  %s3 = inlined_call_operand.vmem [shape: f32[16,2], index: 3, kind: output, shape index: {}]
  %s4 = sld [smem:[#allocation0]]
  $region22: #{lstm_forward.1} parent=0
    _
  %s6 = ssub.s32 1, %s4
  %s7 = scalar_select 0, %s6, %s4
  // Predicated region
  $region2: #{lstm_forward.1} parent=0 // pred_check
    _
  $region3: #{lstm_forward.1} parent=0 // pred_check_branch
    %9 = sbr.rel (0) target = $region5
  $region4: #{lstm_forward.1} parent=0 // pred_region
    _
  $region5: #{lstm_forward.1} parent=0 // pred_fallthru
    _
  // Predicated region
  $region6: #{lstm_forward.1} parent=0 // pred_check
    _
  $region7: #{lstm_forward.1} parent=0 // pred_check_branch
    %11 = sbr.rel (0) target = $region9
  $region8: #{lstm_forward.1} parent=0 // pred_region
    _
  $region9: #{lstm_forward.1} parent=0 // pred_fallthru
    _
  // Predicated region
  $region10: #{lstm_forward.1} parent=0 // pred_check
    _
  $region11: #{lstm_forward.1} parent=0 // pred_check_branch
    %13 = sbr.rel (0) target = $region13
  $region12: #{lstm_forward.1} parent=0 // pred_region
    _
  $region13: #{lstm_forward.1} parent=0 // pred_fallthru
    _
  %v14 = vld [vmem:[%s1 + $0x10] sm:$0xff]
  %v15 = vld [vmem:[%s1 + $0x18] sm:$0xff]
  %v16 = vld [vmem:[%s1 + $0x20] sm:$0xff]
  %v17 = vld [vmem:[%s1 + $0x28] sm:$0xff]
  %v18 = vld [vmem:[%s1 + $0x30] sm:$0xff]
  %v19 = vld [vmem:[%s1 + $0x38] sm:$0xff]
  %v20 = vld [vmem:[%s1 + $0x40] sm:$0xff]
  %v21 = vld [vmem:[%s1 + $0x48] sm:$0xff]
  %v22 = vld [vmem:[%s1 + $0x50] sm:$0xff]
  %v23 = vld [vmem:[%s1 + $0x58] sm:$0xff]
  %v24 = vld [vmem:[%s1 + $0x60] sm:$0xff]
  %v25 = vld [vmem:[%s1 + $0x68] sm:$0xff]
  %v26 = vld [vmem:[%s1 + $0x70] sm:$0xff]
  %v27 = vld [vmem:[%s1 + $0x78] sm:$0xff]
  %v28 = vld [vmem:[%s1 + $0x80] sm:$0xff]
  %v29 = vld [vmem:[%s1 + $0x88] sm:$0xff]
  %s30 = scalar_lea.vmem %s1, 144
  %v31 = vld [vmem:[%s30] ss:$8 sm:$0x3]
  %v32 = vld [vmem:[%s0] sm:$0xff]
  %v33 = vld [vmem:[%s0 + $0x8] sm:$0xff]
  %v34 = vld [vmem:[%s1] sm:$0xff]
  %v35 = vld [vmem:[%s1 + $0x8] sm:$0xff]
  %v37 = vlaneseq
  %v38 = vshrl.u32 %v37, 7
  %v39 = vsub.s32 0, %v38
  %v40 = vrot.slane %v31, %v39
  %v41 = vlaneseq
  %v42 = vshrl.u32 %v41, 7
  %v43 = vsub.s32 1, %v42
  %v44 = vrot.slane %v31, %v43
  %vm47 = vcmask 64512
  %v49 = vsel %vm47, %v32, 0
  %v52 = vsel %vm47, %v33, 0
  %54 = vmatprep.subr.mxu0 %v35
  %55 = vmatpush1.msra.mxu0 %v34
  %56 = vmatprep.subr.mxu0 0.0
  %57 = vmatpush1.msra.mxu0 0.0
  %58 = vmatprep.subr.mxu0 0.0
  %59 = vmatpush1.msra.mxu0 0.0
  %60 = vmatprep.subr.mxu0 0.0
  %61 = vmatpush1.msra.mxu0 0.0
  %62 = vmatprep.subr.mxu0 0.0
  %63 = vmatpush1.msra.mxu0 0.0
  %64 = vmatprep.subr.mxu0 0.0
  %65 = vmatpush1.msra.mxu0 0.0
  %66 = vmatprep.subr.mxu0 0.0
  %67 = vmatpush1.msra.mxu0 0.0
  %68 = vmatprep.subr.mxu0 0.0
  %69 = vmatpush1.msra.mxu0 0.0
  %70 = vmatprep.subr.mxu0 0.0
  %71 = vmatpush1.msra.mxu0 0.0
  %72 = vmatprep.subr.mxu0 0.0
  %73 = vmatpush1.msra.mxu0 0.0
  %74 = vmatprep.subr.mxu0 0.0
  %75 = vmatpush1.msra.mxu0 0.0
  %76 = vmatprep.subr.mxu0 0.0
  %77 = vmatpush1.msra.mxu0 0.0
  %78 = vmatprep.subr.mxu0 0.0
  %79 = vmatpush1.msra.mxu0 0.0
  %80 = vmatprep.subr.mxu0 0.0
  %81 = vmatpush1.msra.mxu0 0.0
  %82 = vmatprep.subr.mxu0 0.0
  %83 = vmatpush1.msra.mxu0 0.0
  %84 = vmatprep.subr.mxu0 0.0
  %85 = vmatpush1.msra.mxu0 0.0
  %86 = vmatprep.subr.mxu0 0.0
  %87 = vmatpush1.msra.mxu0 0.0
  %88 = vmatprep.subr.mxu0 0.0
  %89 = vmatpush1.msra.mxu0 0.0
  %90 = vmatprep.subr.mxu0 0.0
  %91 = vmatpush1.msra.mxu0 0.0
  %92 = vmatprep.subr.mxu0 0.0
  %93 = vmatpush1.msra.mxu0 0.0
  %94 = vmatprep.subr.mxu0 0.0
  %95 = vmatpush1.msra.mxu0 0.0
  %96 = vmatprep.subr.mxu0 0.0
  %97 = vmatpush1.msra.mxu0 0.0
  %98 = vmatprep.subr.mxu0 0.0
  %99 = vmatpush1.msra.mxu0 0.0
  %100 = vmatprep.subr.mxu0 0.0
  %101 = vmatpush1.msra.mxu0 0.0
  %102 = vmatprep.subr.mxu0 0.0
  %103 = vmatpush1.msra.mxu0 0.0
  %104 = vmatprep.subr.mxu0 0.0
  %105 = vmatpush1.msra.mxu0 0.0
  %106 = vmatprep.subr.mxu0 0.0
  %107 = vmatpush1.msra.mxu0 0.0
  %108 = vmatprep.subr.mxu0 0.0
  %109 = vmatpush1.msra.mxu0 0.0
  %110 = vmatprep.subr.mxu0 0.0
  %111 = vmatpush1.msra.mxu0 0.0
  %112 = vmatprep.subr.mxu0 0.0
  %113 = vmatpush1.msra.mxu0 0.0
  %114 = vmatprep.subr.mxu0 0.0
  %115 = vmatpush1.msra.mxu0 0.0
  %116 = vmatprep.subr.mxu0 0.0
  %117 = vmatpush1.msra.mxu0 0.0
  %118 = vmatprep.mubr.f32.mxu0 0.0
  %119 = vmatmul.mubr.f32.gmra.mrb[0].mxu0 %v49
  %v120 = vpop.f32.mrb[0].mxu0
  %v121 = vadd.f32 %v40, %v120
  %v122 = vpop.f32.mrb[0].mxu0
  %v123 = vadd.f32 %v44, %v122
  %124 = vmatprep.mubr.f32.mxu0 0.0
  %125 = vmatmul.mubr.f32.gmra.mrb[0].mxu0 %v52
  %v126 = vpop.f32.mrb[0].mxu0
  %v127 = vadd.f32 %v40, %v126
  %v128 = vpop.f32.mrb[0].mxu0
  %v129 = vadd.f32 %v44, %v128
  %130 = vdwg.mxu0
  %v131 = vxor.u32 %v121, 2147483648
  %v132 = vmul.f32 %v131, 1.442695
  %v133 = vpow.pop %v132
  %v134 = vadd.f32 %v133, 1.0
  %v135 = vrcp.pop %v134
  %v136 = vmul.f32 1.0, %v135
  %v137 = vtanh.pop %v123
  %v138 = vxor.u32 %v123, 2147483648
  %v139 = vmul.f32 %v138, 1.442695
  %v140 = vpow.pop %v139
  %v141 = vadd.f32 %v140, 1.0
  %v142 = vrcp.pop %v141
  %v143 = vmul.f32 1.0, %v142
  %v144 = vmul.f32 %v136, %v137
  %v145 = vtanh.pop %v144
  %147 = vrot.lane.b32.xlu0 %v145, 64
  %v148 = vpop.permute.xlu0 %147
  %v150 = vmul.f32 %v143, %v148
  %152 = vrot.lane.b32.xlu0 %v150, 64
  %v153 = vpop.permute.xlu0 %152
  %vm155 = vcmask 261120
  %v156 = vsel %vm155, 0.0, %v153
  %v157 = vsel %vm155, 0.0, %v144
  %vm158 = vcmask 523264
  %v160 = vsel %vm158, %v156, 0
  %162 = vmatprep.subr.mxu0 %v15
  %163 = vmatpush1.msra.mxu0 %v14
  %164 = vmatprep.subr.mxu0 %v17
  %165 = vmatpush1.msra.mxu0 %v16
  %166 = vmatprep.subr.mxu0 %v19
  %167 = vmatpush1.msra.mxu0 %v18
  %168 = vmatprep.subr.mxu0 %v21
  %169 = vmatpush1.msra.mxu0 %v20
  %170 = vmatprep.subr.mxu0 %v23
  %171 = vmatpush1.msra.mxu0 %v22
  %172 = vmatprep.subr.mxu0 %v25
  %173 = vmatpush1.msra.mxu0 %v24
  %174 = vmatprep.subr.mxu0 %v27
  %175 = vmatpush1.msra.mxu0 %v26
  %176 = vmatprep.subr.mxu0 %v29
  %177 = vmatpush1.msra.mxu0 %v28
  %178 = vmatprep.subr.mxu0 0.0
  %179 = vmatpush1.msra.mxu0 0.0
  %180 = vmatprep.subr.mxu0 0.0
  %181 = vmatpush1.msra.mxu0 0.0
  %182 = vmatprep.subr.mxu0 0.0
  %183 = vmatpush1.msra.mxu0 0.0
  %184 = vmatprep.subr.mxu0 0.0
  %185 = vmatpush1.msra.mxu0 0.0
  %186 = vmatprep.subr.mxu0 0.0
  %187 = vmatpush1.msra.mxu0 0.0
  %188 = vmatprep.subr.mxu0 0.0
  %189 = vmatpush1.msra.mxu0 0.0
  %190 = vmatprep.subr.mxu0 0.0
  %191 = vmatpush1.msra.mxu0 0.0
  %192 = vmatprep.subr.mxu0 0.0
  %193 = vmatpush1.msra.mxu0 0.0
  %194 = vmatprep.subr.mxu0 0.0
  %195 = vmatpush1.msra.mxu0 0.0
  %196 = vmatprep.subr.mxu0 0.0
  %197 = vmatpush1.msra.mxu0 0.0
  %198 = vmatprep.subr.mxu0 0.0
  %199 = vmatpush1.msra.mxu0 0.0
  %200 = vmatprep.subr.mxu0 0.0
  %201 = vmatpush1.msra.mxu0 0.0
  %202 = vmatprep.subr.mxu0 0.0
  %203 = vmatpush1.msra.mxu0 0.0
  %204 = vmatprep.subr.mxu0 0.0
  %205 = vmatpush1.msra.mxu0 0.0
  %206 = vmatprep.subr.mxu0 0.0
  %207 = vmatpush1.msra.mxu0 0.0
  %208 = vmatprep.subr.mxu0 0.0
  %209 = vmatpush1.msra.mxu0 0.0
  %210 = vmatprep.subr.mxu0 0.0
  %211 = vmatpush1.msra.mxu0 0.0
  %212 = vmatprep.subr.mxu0 0.0
  %213 = vmatpush1.msra.mxu0 0.0
  %214 = vmatprep.subr.mxu0 0.0
  %215 = vmatpush1.msra.mxu0 0.0
  %216 = vmatprep.subr.mxu0 0.0
  %217 = vmatpush1.msra.mxu0 0.0
  %218 = vmatprep.subr.mxu0 0.0
  %219 = vmatpush1.msra.mxu0 0.0
  %220 = vmatprep.subr.mxu0 0.0
  %221 = vmatpush1.msra.mxu0 0.0
  %222 = vmatprep.subr.mxu0 0.0
  %223 = vmatpush1.msra.mxu0 0.0
  %224 = vmatprep.subr.mxu0 0.0
  %225 = vmatpush1.msra.mxu0 0.0
  %226 = vmatprep.mubr.f32.mxu0 0.0
  %227 = vmatmul.mubr.f32.gmra.mrb[0].mxu0 %v160
  %v228 = vpop.f32.mrb[0].mxu0
  %v229 = vadd.f32 0.0, %v228
  %v230 = vpop.f32.mrb[0].mxu0
  %v231 = vadd.f32 0.0, %v230
  %232 = vdwg.mxu0
  %v235 = vrot.slane %v229, 7
  %v236 = vrot.slane %v231, 7
  %v239 = vadd.f32 %v121, %v235
  %v240 = vadd.f32 %v123, %v236
  %v241 = vxor.u32 %v239, 2147483648
  %v242 = vxor.u32 %v240, 2147483648
  %v243 = vmul.f32 %v241, 1.442695
  %v244 = vpow.pop %v243
  %v245 = vmul.f32 %v242, 1.442695
  %v246 = vpow.pop %v245
  %v247 = vadd.f32 %v244, 1.0
  %v248 = vadd.f32 %v246, 1.0
  %v249 = vrcp.pop %v247
  %v250 = vmul.f32 1.0, %v249
  %v251 = vrcp.pop %v248
  %v252 = vmul.f32 1.0, %v251
  %v253 = vtanh.pop %v240
  %v255 = vrot.slane %v157, 7
  %256 = vrot.lane.b32.xlu0 %v255, 64
  %v257 = vpop.permute.xlu0 %256
  %v259 = vmul.f32 %v250, %v257
  %v260 = vmul.f32 %v250, %v253
  %262 = vrot.lane.b32.xlu0 %v260, 64
  %v263 = vpop.permute.xlu0 %262
  %v265 = vadd.f32 %v259, %v263
  %v266 = vtanh.pop %v265
  %v267 = vmul.f32 %v252, %v266
  %v269 = vrot.slane %v267, 1
  %270 = vrot.lane.b32.xlu0 %v269, 64
  %v271 = vpop.permute.xlu0 %270
  %v272 = vsel %vm158, %v271, 0
  %274 = vmatprep.subr.mxu0 %v15
  %275 = vmatpush1.msra.mxu0 %v14
  %276 = vmatprep.subr.mxu0 %v17
  %277 = vmatpush1.msra.mxu0 %v16
  %278 = vmatprep.subr.mxu0 %v19
  %279 = vmatpush1.msra.mxu0 %v18
  %280 = vmatprep.subr.mxu0 %v21
  %281 = vmatpush1.msra.mxu0 %v20
  %282 = vmatprep.subr.mxu0 %v23
  %283 = vmatpush1.msra.mxu0 %v22
  %284 = vmatprep.subr.mxu0 %v25
  %285 = vmatpush1.msra.mxu0 %v24
  %286 = vmatprep.subr.mxu0 %v27
  %287 = vmatpush1.msra.mxu0 %v26
  %288 = vmatprep.subr.mxu0 %v29
  %289 = vmatpush1.msra.mxu0 %v28
  %290 = vmatprep.subr.mxu0 0.0
  %291 = vmatpush1.msra.mxu0 0.0
  %292 = vmatprep.subr.mxu0 0.0
  %293 = vmatpush1.msra.mxu0 0.0
  %294 = vmatprep.subr.mxu0 0.0
  %295 = vmatpush1.msra.mxu0 0.0
  %296 = vmatprep.subr.mxu0 0.0
  %297 = vmatpush1.msra.mxu0 0.0
  %298 = vmatprep.subr.mxu0 0.0
  %299 = vmatpush1.msra.mxu0 0.0
  %300 = vmatprep.subr.mxu0 0.0
  %301 = vmatpush1.msra.mxu0 0.0
  %302 = vmatprep.subr.mxu0 0.0
  %303 = vmatpush1.msra.mxu0 0.0
  %304 = vmatprep.subr.mxu0 0.0
  %305 = vmatpush1.msra.mxu0 0.0
  %306 = vmatprep.subr.mxu0 0.0
  %307 = vmatpush1.msra.mxu0 0.0
  %308 = vmatprep.subr.mxu0 0.0
  %309 = vmatpush1.msra.mxu0 0.0
  %310 = vmatprep.subr.mxu0 0.0
  %311 = vmatpush1.msra.mxu0 0.0
  %312 = vmatprep.subr.mxu0 0.0
  %313 = vmatpush1.msra.mxu0 0.0
  %314 = vmatprep.subr.mxu0 0.0
  %315 = vmatpush1.msra.mxu0 0.0
  %316 = vmatprep.subr.mxu0 0.0
  %317 = vmatpush1.msra.mxu0 0.0
  %318 = vmatprep.subr.mxu0 0.0
  %319 = vmatpush1.msra.mxu0 0.0
  %320 = vmatprep.subr.mxu0 0.0
  %321 = vmatpush1.msra.mxu0 0.0
  %322 = vmatprep.subr.mxu0 0.0
  %323 = vmatpush1.msra.mxu0 0.0
  %324 = vmatprep.subr.mxu0 0.0
  %325 = vmatpush1.msra.mxu0 0.0
  %326 = vmatprep.subr.mxu0 0.0
  %327 = vmatpush1.msra.mxu0 0.0
  %328 = vmatprep.subr.mxu0 0.0
  %329 = vmatpush1.msra.mxu0 0.0
  %330 = vmatprep.subr.mxu0 0.0
  %331 = vmatpush1.msra.mxu0 0.0
  %332 = vmatprep.subr.mxu0 0.0
  %333 = vmatpush1.msra.mxu0 0.0
  %334 = vmatprep.subr.mxu0 0.0
  %335 = vmatpush1.msra.mxu0 0.0
  %336 = vmatprep.subr.mxu0 0.0
  %337 = vmatpush1.msra.mxu0 0.0
  %338 = vmatprep.mubr.f32.mxu0 0.0
  %339 = vmatmul.mubr.f32.gmra.mrb[0].mxu0 %v272
  %v340 = vpop.f32.mrb[0].mxu0
  %v341 = vadd.f32 0.0, %v340
  %v342 = vpop.f32.mrb[0].mxu0
  %v343 = vadd.f32 0.0, %v342
  %344 = vdwg.mxu0
  %v347 = vrot.slane %v341, 6
  %v348 = vrot.slane %v343, 6
  %v351 = vadd.f32 %v121, %v347
  %v352 = vadd.f32 %v123, %v348
  %v353 = vxor.u32 %v351, 2147483648
  %v354 = vxor.u32 %v352, 2147483648
  %v355 = vmul.f32 %v353, 1.442695
  %v356 = vpow.pop %v355
  %v357 = vmul.f32 %v354, 1.442695
  %v358 = vpow.pop %v357
  %v359 = vadd.f32 %v356, 1.0
  %v360 = vadd.f32 %v358, 1.0
  %v361 = vrcp.pop %v359
  %v362 = vmul.f32 1.0, %v361
  %v363 = vrcp.pop %v360
  %v364 = vmul.f32 1.0, %v363
  %v365 = vtanh.pop %v352
  %v367 = vrot.slane %v265, 7
  %v369 = vmul.f32 %v362, %v367
  %v370 = vmul.f32 %v362, %v365
  %372 = vrot.lane.b32.xlu0 %v370, 64
  %v373 = vpop.permute.xlu0 %372
  %v375 = vadd.f32 %v369, %v373
  %v376 = vtanh.pop %v375
  %v377 = vmul.f32 %v364, %v376
  %v379 = vrot.slane %v377, 2
  %380 = vrot.lane.b32.xlu0 %v379, 64
  %v381 = vpop.permute.xlu0 %380
  %v382 = vsel %vm158, %v381, 0
  %384 = vmatprep.subr.mxu0 %v15
  %385 = vmatpush1.msra.mxu0 %v14
  %386 = vmatprep.subr.mxu0 %v17
  %387 = vmatpush1.msra.mxu0 %v16
  %388 = vmatprep.subr.mxu0 %v19
  %389 = vmatpush1.msra.mxu0 %v18
  %390 = vmatprep.subr.mxu0 %v21
  %391 = vmatpush1.msra.mxu0 %v20
  %392 = vmatprep.subr.mxu0 %v23
  %393 = vmatpush1.msra.mxu0 %v22
  %394 = vmatprep.subr.mxu0 %v25
  %395 = vmatpush1.msra.mxu0 %v24
  %396 = vmatprep.subr.mxu0 %v27
  %397 = vmatpush1.msra.mxu0 %v26
  %398 = vmatprep.subr.mxu0 %v29
  %399 = vmatpush1.msra.mxu0 %v28
  %400 = vmatprep.subr.mxu0 0.0
  %401 = vmatpush1.msra.mxu0 0.0
  %402 = vmatprep.subr.mxu0 0.0
  %403 = vmatpush1.msra.mxu0 0.0
  %404 = vmatprep.subr.mxu0 0.0
  %405 = vmatpush1.msra.mxu0 0.0
  %406 = vmatprep.subr.mxu0 0.0
  %407 = vmatpush1.msra.mxu0 0.0
  %408 = vmatprep.subr.mxu0 0.0
  %409 = vmatpush1.msra.mxu0 0.0
  %410 = vmatprep.subr.mxu0 0.0
  %411 = vmatpush1.msra.mxu0 0.0
  %412 = vmatprep.subr.mxu0 0.0
  %413 = vmatpush1.msra.mxu0 0.0
  %414 = vmatprep.subr.mxu0 0.0
  %415 = vmatpush1.msra.mxu0 0.0
  %416 = vmatprep.subr.mxu0 0.0
  %417 = vmatpush1.msra.mxu0 0.0
  %418 = vmatprep.subr.mxu0 0.0
  %419 = vmatpush1.msra.mxu0 0.0
  %420 = vmatprep.subr.mxu0 0.0
  %421 = vmatpush1.msra.mxu0 0.0
  %422 = vmatprep.subr.mxu0 0.0
  %423 = vmatpush1.msra.mxu0 0.0
  %424 = vmatprep.subr.mxu0 0.0
  %425 = vmatpush1.msra.mxu0 0.0
  %426 = vmatprep.subr.mxu0 0.0
  %427 = vmatpush1.msra.mxu0 0.0
  %428 = vmatprep.subr.mxu0 0.0
  %429 = vmatpush1.msra.mxu0 0.0
  %430 = vmatprep.subr.mxu0 0.0
  %431 = vmatpush1.msra.mxu0 0.0
  %432 = vmatprep.subr.mxu0 0.0
  %433 = vmatpush1.msra.mxu0 0.0
  %434 = vmatprep.subr.mxu0 0.0
  %435 = vmatpush1.msra.mxu0 0.0
  %436 = vmatprep.subr.mxu0 0.0
  %437 = vmatpush1.msra.mxu0 0.0
  %438 = vmatprep.subr.mxu0 0.0
  %439 = vmatpush1.msra.mxu0 0.0
  %440 = vmatprep.subr.mxu0 0.0
  %441 = vmatpush1.msra.mxu0 0.0
  %442 = vmatprep.subr.mxu0 0.0
  %443 = vmatpush1.msra.mxu0 0.0
  %444 = vmatprep.subr.mxu0 0.0
  %445 = vmatpush1.msra.mxu0 0.0
  %446 = vmatprep.subr.mxu0 0.0
  %447 = vmatpush1.msra.mxu0 0.0
  %448 = vmatprep.mubr.f32.mxu0 0.0
  %449 = vmatmul.mubr.f32.gmra.mrb[0].mxu0 %v382
  %v450 = vpop.f32.mrb[0].mxu0
  %v451 = vadd.f32 0.0, %v450
  %v452 = vpop.f32.mrb[0].mxu0
  %v453 = vadd.f32 0.0, %v452
  %454 = vdwg.mxu0
  %v457 = vrot.slane %v451, 5
  %v458 = vrot.slane %v453, 5
  %v461 = vadd.f32 %v121, %v457
  %v462 = vadd.f32 %v123, %v458
  %v463 = vxor.u32 %v461, 2147483648
  %v464 = vxor.u32 %v462, 2147483648
  %v465 = vmul.f32 %v463, 1.442695
  %v466 = vpow.pop %v465
  %v467 = vmul.f32 %v464, 1.442695
  %v468 = vpow.pop %v467
  %v469 = vadd.f32 %v466, 1.0
  %v470 = vadd.f32 %v468, 1.0
  %v471 = vrcp.pop %v469
  %v472 = vmul.f32 1.0, %v471
  %v473 = vrcp.pop %v470
  %v474 = vmul.f32 1.0, %v473
  %v475 = vtanh.pop %v462
  %v477 = vrot.slane %v375, 7
  %v479 = vmul.f32 %v472, %v477
  %v480 = vmul.f32 %v472, %v475
  %482 = vrot.lane.b32.xlu0 %v480, 64
  %v483 = vpop.permute.xlu0 %482
  %v485 = vadd.f32 %v479, %v483
  %v486 = vtanh.pop %v485
  %v487 = vmul.f32 %v474, %v486
  %v489 = vrot.slane %v487, 3
  %490 = vrot.lane.b32.xlu0 %v489, 64
  %v491 = vpop.permute.xlu0 %490
  %v492 = vsel %vm158, %v491, 0
  %494 = vmatprep.subr.mxu0 %v15
  %495 = vmatpush1.msra.mxu0 %v14
  %496 = vmatprep.subr.mxu0 %v17
  %497 = vmatpush1.msra.mxu0 %v16
  %498 = vmatprep.subr.mxu0 %v19
  %499 = vmatpush1.msra.mxu0 %v18
  %500 = vmatprep.subr.mxu0 %v21
  %501 = vmatpush1.msra.mxu0 %v20
  %502 = vmatprep.subr.mxu0 %v23
  %503 = vmatpush1.msra.mxu0 %v22
  %504 = vmatprep.subr.mxu0 %v25
  %505 = vmatpush1.msra.mxu0 %v24
  %506 = vmatprep.subr.mxu0 %v27
  %507 = vmatpush1.msra.mxu0 %v26
  %508 = vmatprep.subr.mxu0 %v29
  %509 = vmatpush1.msra.mxu0 %v28
  %510 = vmatprep.subr.mxu0 0.0
  %511 = vmatpush1.msra.mxu0 0.0
  %512 = vmatprep.subr.mxu0 0.0
  %513 = vmatpush1.msra.mxu0 0.0
  %514 = vmatprep.subr.mxu0 0.0
  %515 = vmatpush1.msra.mxu0 0.0
  %516 = vmatprep.subr.mxu0 0.0
  %517 = vmatpush1.msra.mxu0 0.0
  %518 = vmatprep.subr.mxu0 0.0
  %519 = vmatpush1.msra.mxu0 0.0
  %520 = vmatprep.subr.mxu0 0.0
  %521 = vmatpush1.msra.mxu0 0.0
  %522 = vmatprep.subr.mxu0 0.0
  %523 = vmatpush1.msra.mxu0 0.0
  %524 = vmatprep.subr.mxu0 0.0
  %525 = vmatpush1.msra.mxu0 0.0
  %526 = vmatprep.subr.mxu0 0.0
  %527 = vmatpush1.msra.mxu0 0.0
  %528 = vmatprep.subr.mxu0 0.0
  %529 = vmatpush1.msra.mxu0 0.0
  %530 = vmatprep.subr.mxu0 0.0
  %531 = vmatpush1.msra.mxu0 0.0
  %532 = vmatprep.subr.mxu0 0.0
  %533 = vmatpush1.msra.mxu0 0.0
  %534 = vmatprep.subr.mxu0 0.0
  %535 = vmatpush1.msra.mxu0 0.0
  %536 = vmatprep.subr.mxu0 0.0
  %537 = vmatpush1.msra.mxu0 0.0
  %538 = vmatprep.subr.mxu0 0.0
  %539 = vmatpush1.msra.mxu0 0.0
  %540 = vmatprep.subr.mxu0 0.0
  %541 = vmatpush1.msra.mxu0 0.0
  %542 = vmatprep.subr.mxu0 0.0
  %543 = vmatpush1.msra.mxu0 0.0
  %544 = vmatprep.subr.mxu0 0.0
  %545 = vmatpush1.msra.mxu0 0.0
  %546 = vmatprep.subr.mxu0 0.0
  %547 = vmatpush1.msra.mxu0 0.0
  %548 = vmatprep.subr.mxu0 0.0
  %549 = vmatpush1.msra.mxu0 0.0
  %550 = vmatprep.subr.mxu0 0.0
  %551 = vmatpush1.msra.mxu0 0.0
  %552 = vmatprep.subr.mxu0 0.0
  %553 = vmatpush1.msra.mxu0 0.0
  %554 = vmatprep.subr.mxu0 0.0
  %555 = vmatpush1.msra.mxu0 0.0
  %556 = vmatprep.subr.mxu0 0.0
  %557 = vmatpush1.msra.mxu0 0.0
  %558 = vmatprep.mubr.f32.mxu0 0.0
  %559 = vmatmul.mubr.f32.gmra.mrb[0].mxu0 %v492
  %v560 = vpop.f32.mrb[0].mxu0
  %v561 = vadd.f32 0.0, %v560
  %v562 = vpop.f32.mrb[0].mxu0
  %v563 = vadd.f32 0.0, %v562
  %564 = vdwg.mxu0
  %v567 = vrot.slane %v561, 4
  %v568 = vrot.slane %v563, 4
  %v571 = vadd.f32 %v121, %v567
  %v572 = vadd.f32 %v123, %v568
  %v573 = vxor.u32 %v571, 2147483648
  %v574 = vxor.u32 %v572, 2147483648
  %v575 = vmul.f32 %v573, 1.442695
  %v576 = vpow.pop %v575
  %v577 = vmul.f32 %v574, 1.442695
  %v578 = vpow.pop %v577
  %v579 = vadd.f32 %v576, 1.0
  %v580 = vadd.f32 %v578, 1.0
  %v581 = vrcp.pop %v579
  %v582 = vmul.f32 1.0, %v581
  %v583 = vrcp.pop %v580
  %v584 = vmul.f32 1.0, %v583
  %v585 = vtanh.pop %v572
  %v587 = vrot.slane %v485, 7
  %v589 = vmul.f32 %v582, %v587
  %v590 = vmul.f32 %v582, %v585
  %592 = vrot.lane.b32.xlu0 %v590, 64
  %v593 = vpop.permute.xlu0 %592
  %v595 = vadd.f32 %v589, %v593
  %v596 = vtanh.pop %v595
  %v597 = vmul.f32 %v584, %v596
  %v599 = vrot.slane %v597, 4
  %600 = vrot.lane.b32.xlu0 %v599, 64
  %v601 = vpop.permute.xlu0 %600
  %v602 = vsel %vm158, %v601, 0
  %604 = vmatprep.subr.mxu0 %v15
  %605 = vmatpush1.msra.mxu0 %v14
  %606 = vmatprep.subr.mxu0 %v17
  %607 = vmatpush1.msra.mxu0 %v16
  %608 = vmatprep.subr.mxu0 %v19
  %609 = vmatpush1.msra.mxu0 %v18
  %610 = vmatprep.subr.mxu0 %v21
  %611 = vmatpush1.msra.mxu0 %v20
  %612 = vmatprep.subr.mxu0 %v23
  %613 = vmatpush1.msra.mxu0 %v22
  %614 = vmatprep.subr.mxu0 %v25
  %615 = vmatpush1.msra.mxu0 %v24
  %616 = vmatprep.subr.mxu0 %v27
  %617 = vmatpush1.msra.mxu0 %v26
  %618 = vmatprep.subr.mxu0 %v29
  %619 = vmatpush1.msra.mxu0 %v28
  %620 = vmatprep.subr.mxu0 0.0
  %621 = vmatpush1.msra.mxu0 0.0
  %622 = vmatprep.subr.mxu0 0.0
  %623 = vmatpush1.msra.mxu0 0.0
  %624 = vmatprep.subr.mxu0 0.0
  %625 = vmatpush1.msra.mxu0 0.0
  %626 = vmatprep.subr.mxu0 0.0
  %627 = vmatpush1.msra.mxu0 0.0
  %628 = vmatprep.subr.mxu0 0.0
  %629 = vmatpush1.msra.mxu0 0.0
  %630 = vmatprep.subr.mxu0 0.0
  %631 = vmatpush1.msra.mxu0 0.0
  %632 = vmatprep.subr.mxu0 0.0
  %633 = vmatpush1.msra.mxu0 0.0
  %634 = vmatprep.subr.mxu0 0.0
  %635 = vmatpush1.msra.mxu0 0.0
  %636 = vmatprep.subr.mxu0 0.0
  %637 = vmatpush1.msra.mxu0 0.0
  %638 = vmatprep.subr.mxu0 0.0
  %639 = vmatpush1.msra.mxu0 0.0
  %640 = vmatprep.subr.mxu0 0.0
  %641 = vmatpush1.msra.mxu0 0.0
  %642 = vmatprep.subr.mxu0 0.0
  %643 = vmatpush1.msra.mxu0 0.0
  %644 = vmatprep.subr.mxu0 0.0
  %645 = vmatpush1.msra.mxu0 0.0
  %646 = vmatprep.subr.mxu0 0.0
  %647 = vmatpush1.msra.mxu0 0.0
  %648 = vmatprep.subr.mxu0 0.0
  %649 = vmatpush1.msra.mxu0 0.0
  %650 = vmatprep.subr.mxu0 0.0
  %651 = vmatpush1.msra.mxu0 0.0
  %652 = vmatprep.subr.mxu0 0.0
  %653 = vmatpush1.msra.mxu0 0.0
  %654 = vmatprep.subr.mxu0 0.0
  %655 = vmatpush1.msra.mxu0 0.0
  %656 = vmatprep.subr.mxu0 0.0
  %657 = vmatpush1.msra.mxu0 0.0
  %658 = vmatprep.subr.mxu0 0.0
  %659 = vmatpush1.msra.mxu0 0.0
  %660 = vmatprep.subr.mxu0 0.0
  %661 = vmatpush1.msra.mxu0 0.0
  %662 = vmatprep.subr.mxu0 0.0
  %663 = vmatpush1.msra.mxu0 0.0
  %664 = vmatprep.subr.mxu0 0.0
  %665 = vmatpush1.msra.mxu0 0.0
  %666 = vmatprep.subr.mxu0 0.0
  %667 = vmatpush1.msra.mxu0 0.0
  %668 = vmatprep.mubr.f32.mxu0 0.0
  %669 = vmatmul.mubr.f32.gmra.mrb[0].mxu0 %v602
  %v670 = vpop.f32.mrb[0].mxu0
  %v671 = vadd.f32 0.0, %v670
  %v672 = vpop.f32.mrb[0].mxu0
  %v673 = vadd.f32 0.0, %v672
  %674 = vdwg.mxu0
  %v677 = vrot.slane %v671, 3
  %v678 = vrot.slane %v673, 3
  %v681 = vadd.f32 %v121, %v677
  %v682 = vadd.f32 %v123, %v678
  %v683 = vxor.u32 %v681, 2147483648
  %v684 = vxor.u32 %v682, 2147483648
  %v685 = vmul.f32 %v683, 1.442695
  %v686 = vpow.pop %v685
  %v687 = vmul.f32 %v684, 1.442695
  %v688 = vpow.pop %v687
  %v689 = vadd.f32 %v686, 1.0
  %v690 = vadd.f32 %v688, 1.0
  %v691 = vrcp.pop %v689
  %v692 = vmul.f32 1.0, %v691
  %v693 = vrcp.pop %v690
  %v694 = vmul.f32 1.0, %v693
  %v695 = vtanh.pop %v682
  %v697 = vrot.slane %v595, 7
  %v699 = vmul.f32 %v692, %v697
  %v700 = vmul.f32 %v692, %v695
  %702 = vrot.lane.b32.xlu0 %v700, 64
  %v703 = vpop.permute.xlu0 %702
  %v705 = vadd.f32 %v699, %v703
  %v706 = vtanh.pop %v705
  %v707 = vmul.f32 %v694, %v706
  %v709 = vrot.slane %v707, 5
  %710 = vrot.lane.b32.xlu0 %v709, 64
  %v711 = vpop.permute.xlu0 %710
  %v712 = vsel %vm158, %v711, 0
  %714 = vmatprep.subr.mxu0 %v15
  %715 = vmatpush1.msra.mxu0 %v14
  %716 = vmatprep.subr.mxu0 %v17
  %717 = vmatpush1.msra.mxu0 %v16
  %718 = vmatprep.subr.mxu0 %v19
  %719 = vmatpush1.msra.mxu0 %v18
  %720 = vmatprep.subr.mxu0 %v21
  %721 = vmatpush1.msra.mxu0 %v20
  %722 = vmatprep.subr.mxu0 %v23
  %723 = vmatpush1.msra.mxu0 %v22
  %724 = vmatprep.subr.mxu0 %v25
  %725 = vmatpush1.msra.mxu0 %v24
  %726 = vmatprep.subr.mxu0 %v27
  %727 = vmatpush1.msra.mxu0 %v26
  %728 = vmatprep.subr.mxu0 %v29
  %729 = vmatpush1.msra.mxu0 %v28
  %730 = vmatprep.subr.mxu0 0.0
  %731 = vmatpush1.msra.mxu0 0.0
  %732 = vmatprep.subr.mxu0 0.0
  %733 = vmatpush1.msra.mxu0 0.0
  %734 = vmatprep.subr.mxu0 0.0
  %735 = vmatpush1.msra.mxu0 0.0
  %736 = vmatprep.subr.mxu0 0.0
  %737 = vmatpush1.msra.mxu0 0.0
  %738 = vmatprep.subr.mxu0 0.0
  %739 = vmatpush1.msra.mxu0 0.0
  %740 = vmatprep.subr.mxu0 0.0
  %741 = vmatpush1.msra.mxu0 0.0
  %742 = vmatprep.subr.mxu0 0.0
  %743 = vmatpush1.msra.mxu0 0.0
  %744 = vmatprep.subr.mxu0 0.0
  %745 = vmatpush1.msra.mxu0 0.0
  %746 = vmatprep.subr.mxu0 0.0
  %747 = vmatpush1.msra.mxu0 0.0
  %748 = vmatprep.subr.mxu0 0.0
  %749 = vmatpush1.msra.mxu0 0.0
  %750 = vmatprep.subr.mxu0 0.0
  %751 = vmatpush1.msra.mxu0 0.0
  %752 = vmatprep.subr.mxu0 0.0
  %753 = vmatpush1.msra.mxu0 0.0
  %754 = vmatprep.subr.mxu0 0.0
  %755 = vmatpush1.msra.mxu0 0.0
  %756 = vmatprep.subr.mxu0 0.0
  %757 = vmatpush1.msra.mxu0 0.0
  %758 = vmatprep.subr.mxu0 0.0
  %759 = vmatpush1.msra.mxu0 0.0
  %760 = vmatprep.subr.mxu0 0.0
  %761 = vmatpush1.msra.mxu0 0.0
  %762 = vmatprep.subr.mxu0 0.0
  %763 = vmatpush1.msra.mxu0 0.0
  %764 = vmatprep.subr.mxu0 0.0
  %765 = vmatpush1.msra.mxu0 0.0
  %766 = vmatprep.subr.mxu0 0.0
  %767 = vmatpush1.msra.mxu0 0.0
  %768 = vmatprep.subr.mxu0 0.0
  %769 = vmatpush1.msra.mxu0 0.0
  %770 = vmatprep.subr.mxu0 0.0
  %771 = vmatpush1.msra.mxu0 0.0
  %772 = vmatprep.subr.mxu0 0.0
  %773 = vmatpush1.msra.mxu0 0.0
  %774 = vmatprep.subr.mxu0 0.0
  %775 = vmatpush1.msra.mxu0 0.0
  %776 = vmatprep.subr.mxu0 0.0
  %777 = vmatpush1.msra.mxu0 0.0
  %778 = vmatprep.mubr.f32.mxu0 0.0
  %779 = vmatmul.mubr.f32.gmra.mrb[0].mxu0 %v712
  %v780 = vpop.f32.mrb[0].mxu0
  %v781 = vadd.f32 0.0, %v780
  %v782 = vpop.f32.mrb[0].mxu0
  %v783 = vadd.f32 0.0, %v782
  %784 = vdwg.mxu0
  %v787 = vrot.slane %v781, 2
  %v788 = vrot.slane %v783, 2
  %v791 = vadd.f32 %v121, %v787
  %v792 = vadd.f32 %v123, %v788
  %v793 = vxor.u32 %v791, 2147483648
  %v794 = vxor.u32 %v792, 2147483648
  %v795 = vmul.f32 %v793, 1.442695
  %v796 = vpow.pop %v795
  %v797 = vmul.f32 %v794, 1.442695
  %v798 = vpow.pop %v797
  %v799 = vadd.f32 %v796, 1.0
  %v800 = vadd.f32 %v798, 1.0
  %v801 = vrcp.pop %v799
  %v802 = vmul.f32 1.0, %v801
  %v803 = vrcp.pop %v800
  %v804 = vmul.f32 1.0, %v803
  %v805 = vtanh.pop %v792
  %v807 = vrot.slane %v705, 7
  %v809 = vmul.f32 %v802, %v807
  %v810 = vmul.f32 %v802, %v805
  %812 = vrot.lane.b32.xlu0 %v810, 64
  %v813 = vpop.permute.xlu0 %812
  %v815 = vadd.f32 %v809, %v813
  %v816 = vtanh.pop %v815
  %v817 = vmul.f32 %v804, %v816
  %v819 = vrot.slane %v817, 6
  %820 = vrot.lane.b32.xlu0 %v819, 64
  %v821 = vpop.permute.xlu0 %820
  %v822 = vsel %vm158, %v821, 0
  %824 = vmatprep.subr.mxu0 %v15
  %825 = vmatpush1.msra.mxu0 %v14
  %826 = vmatprep.subr.mxu0 %v17
  %827 = vmatpush1.msra.mxu0 %v16
  %828 = vmatprep.subr.mxu0 %v19
  %829 = vmatpush1.msra.mxu0 %v18
  %830 = vmatprep.subr.mxu0 %v21
  %831 = vmatpush1.msra.mxu0 %v20
  %832 = vmatprep.subr.mxu0 %v23
  %833 = vmatpush1.msra.mxu0 %v22
  %834 = vmatprep.subr.mxu0 %v25
  %835 = vmatpush1.msra.mxu0 %v24
  %836 = vmatprep.subr.mxu0 %v27
  %837 = vmatpush1.msra.mxu0 %v26
  %838 = vmatprep.subr.mxu0 %v29
  %839 = vmatpush1.msra.mxu0 %v28
  %840 = vmatprep.subr.mxu0 0.0
  %841 = vmatpush1.msra.mxu0 0.0
  %842 = vmatprep.subr.mxu0 0.0
  %843 = vmatpush1.msra.mxu0 0.0
  %844 = vmatprep.subr.mxu0 0.0
  %845 = vmatpush1.msra.mxu0 0.0
  %846 = vmatprep.subr.mxu0 0.0
  %847 = vmatpush1.msra.mxu0 0.0
  %848 = vmatprep.subr.mxu0 0.0
  %849 = vmatpush1.msra.mxu0 0.0
  %850 = vmatprep.subr.mxu0 0.0
  %851 = vmatpush1.msra.mxu0 0.0
  %852 = vmatprep.subr.mxu0 0.0
  %853 = vmatpush1.msra.mxu0 0.0
  %854 = vmatprep.subr.mxu0 0.0
  %855 = vmatpush1.msra.mxu0 0.0
  %856 = vmatprep.subr.mxu0 0.0
  %857 = vmatpush1.msra.mxu0 0.0
  %858 = vmatprep.subr.mxu0 0.0
  %859 = vmatpush1.msra.mxu0 0.0
  %860 = vmatprep.subr.mxu0 0.0
  %861 = vmatpush1.msra.mxu0 0.0
  %862 = vmatprep.subr.mxu0 0.0
  %863 = vmatpush1.msra.mxu0 0.0
  %864 = vmatprep.subr.mxu0 0.0
  %865 = vmatpush1.msra.mxu0 0.0
  %866 = vmatprep.subr.mxu0 0.0
  %867 = vmatpush1.msra.mxu0 0.0
  %868 = vmatprep.subr.mxu0 0.0
  %869 = vmatpush1.msra.mxu0 0.0
  %870 = vmatprep.subr.mxu0 0.0
  %871 = vmatpush1.msra.mxu0 0.0
  %872 = vmatprep.subr.mxu0 0.0
  %873 = vmatpush1.msra.mxu0 0.0
  %874 = vmatprep.subr.mxu0 0.0
  %875 = vmatpush1.msra.mxu0 0.0
  %876 = vmatprep.subr.mxu0 0.0
  %877 = vmatpush1.msra.mxu0 0.0
  %878 = vmatprep.subr.mxu0 0.0
  %879 = vmatpush1.msra.mxu0 0.0
  %880 = vmatprep.subr.mxu0 0.0
  %881 = vmatpush1.msra.mxu0 0.0
  %882 = vmatprep.subr.mxu0 0.0
  %883 = vmatpush1.msra.mxu0 0.0
  %884 = vmatprep.subr.mxu0 0.0
  %885 = vmatpush1.msra.mxu0 0.0
  %886 = vmatprep.subr.mxu0 0.0
  %887 = vmatpush1.msra.mxu0 0.0
  %888 = vmatprep.mubr.f32.mxu0 0.0
  %889 = vmatmul.mubr.f32.gmra.mrb[0].mxu0 %v822
  %v890 = vpop.f32.mrb[0].mxu0
  %v891 = vadd.f32 0.0, %v890
  %v892 = vpop.f32.mrb[0].mxu0
  %v893 = vadd.f32 0.0, %v892
  %894 = vdwg.mxu0
  %v897 = vrot.slane %v891, 1
  %v898 = vrot.slane %v893, 1
  %v901 = vadd.f32 %v121, %v897
  %v902 = vadd.f32 %v123, %v898
  %v903 = vxor.u32 %v901, 2147483648
  %v904 = vxor.u32 %v902, 2147483648
  %v905 = vmul.f32 %v903, 1.442695
  %v906 = vpow.pop %v905
  %v907 = vmul.f32 %v904, 1.442695
  %v908 = vpow.pop %v907
  %v909 = vadd.f32 %v906, 1.0
  %v910 = vadd.f32 %v908, 1.0
  %v911 = vrcp.pop %v909
  %v912 = vmul.f32 1.0, %v911
  %v913 = vrcp.pop %v910
  %v914 = vmul.f32 1.0, %v913
  %v915 = vtanh.pop %v902
  %v917 = vrot.slane %v815, 7
  %v919 = vmul.f32 %v912, %v917
  %v920 = vmul.f32 %v912, %v915
  %922 = vrot.lane.b32.xlu0 %v920, 64
  %v923 = vpop.permute.xlu0 %922
  %v925 = vadd.f32 %v919, %v923
  %v926 = vtanh.pop %v925
  %v927 = vmul.f32 %v914, %v926
  %v929 = vrot.slane %v927, 7
  %930 = vrot.lane.b32.xlu0 %v929, 64
  %v931 = vpop.permute.xlu0 %930
  %v932 = vsel %vm158, %v931, 0
  %934 = vmatprep.subr.mxu0 %v15
  %935 = vmatpush1.msra.mxu0 %v14
  %936 = vmatprep.subr.mxu0 %v17
  %937 = vmatpush1.msra.mxu0 %v16
  %938 = vmatprep.subr.mxu0 %v19
  %939 = vmatpush1.msra.mxu0 %v18
  %940 = vmatprep.subr.mxu0 %v21
  %941 = vmatpush1.msra.mxu0 %v20
  %942 = vmatprep.subr.mxu0 %v23
  %943 = vmatpush1.msra.mxu0 %v22
  %944 = vmatprep.subr.mxu0 %v25
  %945 = vmatpush1.msra.mxu0 %v24
  %946 = vmatprep.subr.mxu0 %v27
  %947 = vmatpush1.msra.mxu0 %v26
  %948 = vmatprep.subr.mxu0 %v29
  %949 = vmatpush1.msra.mxu0 %v28
  %950 = vmatprep.subr.mxu0 0.0
  %951 = vmatpush1.msra.mxu0 0.0
  %952 = vmatprep.subr.mxu0 0.0
  %953 = vmatpush1.msra.mxu0 0.0
  %954 = vmatprep.subr.mxu0 0.0
  %955 = vmatpush1.msra.mxu0 0.0
  %956 = vmatprep.subr.mxu0 0.0
  %957 = vmatpush1.msra.mxu0 0.0
  %958 = vmatprep.subr.mxu0 0.0
  %959 = vmatpush1.msra.mxu0 0.0
  %960 = vmatprep.subr.mxu0 0.0
  %961 = vmatpush1.msra.mxu0 0.0
  %962 = vmatprep.subr.mxu0 0.0
  %963 = vmatpush1.msra.mxu0 0.0
  %964 = vmatprep.subr.mxu0 0.0
  %965 = vmatpush1.msra.mxu0 0.0
  %966 = vmatprep.subr.mxu0 0.0
  %967 = vmatpush1.msra.mxu0 0.0
  %968 = vmatprep.subr.mxu0 0.0
  %969 = vmatpush1.msra.mxu0 0.0
  %970 = vmatprep.subr.mxu0 0.0
  %971 = vmatpush1.msra.mxu0 0.0
  %972 = vmatprep.subr.mxu0 0.0
  %973 = vmatpush1.msra.mxu0 0.0
  %974 = vmatprep.subr.mxu0 0.0
  %975 = vmatpush1.msra.mxu0 0.0
  %976 = vmatprep.subr.mxu0 0.0
  %977 = vmatpush1.msra.mxu0 0.0
  %978 = vmatprep.subr.mxu0 0.0
  %979 = vmatpush1.msra.mxu0 0.0
  %980 = vmatprep.subr.mxu0 0.0
  %981 = vmatpush1.msra.mxu0 0.0
  %982 = vmatprep.subr.mxu0 0.0
  %983 = vmatpush1.msra.mxu0 0.0
  %984 = vmatprep.subr.mxu0 0.0
  %985 = vmatpush1.msra.mxu0 0.0
  %986 = vmatprep.subr.mxu0 0.0
  %987 = vmatpush1.msra.mxu0 0.0
  %988 = vmatprep.subr.mxu0 0.0
  %989 = vmatpush1.msra.mxu0 0.0
  %990 = vmatprep.subr.mxu0 0.0
  %991 = vmatpush1.msra.mxu0 0.0
  %992 = vmatprep.subr.mxu0 0.0
  %993 = vmatpush1.msra.mxu0 0.0
  %994 = vmatprep.subr.mxu0 0.0
  %995 = vmatpush1.msra.mxu0 0.0
  %996 = vmatprep.subr.mxu0 0.0
  %997 = vmatpush1.msra.mxu0 0.0
  %998 = vmatprep.mubr.f32.mxu0 0.0
  %999 = vmatmul.mubr.f32.gmra.mrb[0].mxu0 %v932
  %v1000 = vpop.f32.mrb[0].mxu0
  %v1001 = vadd.f32 0.0, %v1000
  %v1002 = vpop.f32.mrb[0].mxu0
  %v1003 = vadd.f32 0.0, %v1002
  %1004 = vdwg.mxu0
  %v1005 = vadd.f32 %v127, %v1001
  %v1006 = vadd.f32 %v129, %v1003
  %v1007 = vxor.u32 %v1005, 2147483648
  %v1008 = vxor.u32 %v1006, 2147483648
  %v1009 = vmul.f32 %v1007, 1.442695
  %v1010 = vpow.pop %v1009
  %v1011 = vmul.f32 %v1008, 1.442695
  %v1012 = vpow.pop %v1011
  %v1013 = vadd.f32 %v1010, 1.0
  %v1014 = vadd.f32 %v1012, 1.0
  %v1015 = vrcp.pop %v1013
  %v1016 = vmul.f32 1.0, %v1015
  %v1017 = vrcp.pop %v1014
  %v1018 = vmul.f32 1.0, %v1017
  %v1019 = vtanh.pop %v1006
  %v1021 = vrot.slane %v925, 7
  %v1023 = vmul.f32 %v1016, %v1021
  %v1024 = vmul.f32 %v1016, %v1019
  %1026 = vrot.lane.b32.xlu0 %v1024, 64
  %v1027 = vpop.permute.xlu0 %1026
  %v1029 = vadd.f32 %v1023, %v1027
  %v1030 = vtanh.pop %v1029
  %v1031 = vmul.f32 %v1018, %v1030
  %1033 = vrot.lane.b32.xlu0 %v1031, 64
  %v1034 = vpop.permute.xlu0 %1033
  %v1035 = vsel %vm158, %v1034, 0
  %1037 = vmatprep.subr.mxu0 %v15
  %1038 = vmatpush1.msra.mxu0 %v14
  %1039 = vmatprep.subr.mxu0 %v17
  %1040 = vmatpush1.msra.mxu0 %v16
  %1041 = vmatprep.subr.mxu0 %v19
  %1042 = vmatpush1.msra.mxu0 %v18
  %1043 = vmatprep.subr.mxu0 %v21
  %1044 = vmatpush1.msra.mxu0 %v20
  %1045 = vmatprep.subr.mxu0 %v23
  %1046 = vmatpush1.msra.mxu0 %v22
  %1047 = vmatprep.subr.mxu0 %v25
  %1048 = vmatpush1.msra.mxu0 %v24
  %1049 = vmatprep.subr.mxu0 %v27
  %1050 = vmatpush1.msra.mxu0 %v26
  %1051 = vmatprep.subr.mxu0 %v29
  %1052 = vmatpush1.msra.mxu0 %v28
  %1053 = vmatprep.subr.mxu0 0.0
  %1054 = vmatpush1.msra.mxu0 0.0
  %1055 = vmatprep.subr.mxu0 0.0
  %1056 = vmatpush1.msra.mxu0 0.0
  %1057 = vmatprep.subr.mxu0 0.0
  %1058 = vmatpush1.msra.mxu0 0.0
  %1059 = vmatprep.subr.mxu0 0.0
  %1060 = vmatpush1.msra.mxu0 0.0
  %1061 = vmatprep.subr.mxu0 0.0
  %1062 = vmatpush1.msra.mxu0 0.0
  %1063 = vmatprep.subr.mxu0 0.0
  %1064 = vmatpush1.msra.mxu0 0.0
  %1065 = vmatprep.subr.mxu0 0.0
  %1066 = vmatpush1.msra.mxu0 0.0
  %1067 = vmatprep.subr.mxu0 0.0
  %1068 = vmatpush1.msra.mxu0 0.0
  %1069 = vmatprep.subr.mxu0 0.0
  %1070 = vmatpush1.msra.mxu0 0.0
  %1071 = vmatprep.subr.mxu0 0.0
  %1072 = vmatpush1.msra.mxu0 0.0
  %1073 = vmatprep.subr.mxu0 0.0
  %1074 = vmatpush1.msra.mxu0 0.0
  %1075 = vmatprep.subr.mxu0 0.0
  %1076 = vmatpush1.msra.mxu0 0.0
  %1077 = vmatprep.subr.mxu0 0.0
  %1078 = vmatpush1.msra.mxu0 0.0
  %1079 = vmatprep.subr.mxu0 0.0
  %1080 = vmatpush1.msra.mxu0 0.0
  %1081 = vmatprep.subr.mxu0 0.0
  %1082 = vmatpush1.msra.mxu0 0.0
  %1083 = vmatprep.subr.mxu0 0.0
  %1084 = vmatpush1.msra.mxu0 0.0
  %1085 = vmatprep.subr.mxu0 0.0
  %1086 = vmatpush1.msra.mxu0 0.0
  %1087 = vmatprep.subr.mxu0 0.0
  %1088 = vmatpush1.msra.mxu0 0.0
  %1089 = vmatprep.subr.mxu0 0.0
  %1090 = vmatpush1.msra.mxu0 0.0
  %1091 = vmatprep.subr.mxu0 0.0
  %1092 = vmatpush1.msra.mxu0 0.0
  %1093 = vmatprep.subr.mxu0 0.0
  %1094 = vmatpush1.msra.mxu0 0.0
  %1095 = vmatprep.subr.mxu0 0.0
  %1096 = vmatpush1.msra.mxu0 0.0
  %1097 = vmatprep.subr.mxu0 0.0
  %1098 = vmatpush1.msra.mxu0 0.0
  %1099 = vmatprep.subr.mxu0 0.0
  %1100 = vmatpush1.msra.mxu0 0.0
  %1101 = vmatprep.mubr.f32.mxu0 0.0
  %1102 = vmatmul.mubr.f32.gmra.mrb[0].mxu0 %v1035
  %v1103 = vpop.f32.mrb[0].mxu0
  %v1104 = vadd.f32 0.0, %v1103
  %v1105 = vpop.f32.mrb[0].mxu0
  %v1106 = vadd.f32 0.0, %v1105
  %1107 = vdwg.mxu0
  %v1110 = vrot.slane %v1104, 7
  %v1111 = vrot.slane %v1106, 7
  %v1114 = vadd.f32 %v127, %v1110
  %v1115 = vadd.f32 %v129, %v1111
  %v1116 = vxor.u32 %v1114, 2147483648
  %v1117 = vxor.u32 %v1115, 2147483648
  %v1118 = vmul.f32 %v1116, 1.442695
  %v1119 = vpow.pop %v1118
  %v1120 = vmul.f32 %v1117, 1.442695
  %v1121 = vpow.pop %v1120
  %v1122 = vadd.f32 %v1119, 1.0
  %v1123 = vadd.f32 %v1121, 1.0
  %v1124 = vrcp.pop %v1122
  %v1125 = vmul.f32 1.0, %v1124
  %v1126 = vrcp.pop %v1123
  %v1127 = vmul.f32 1.0, %v1126
  %v1128 = vtanh.pop %v1115
  %v1130 = vrot.slane %v1029, 7
  %v1132 = vmul.f32 %v1125, %v1130
  %v1133 = vmul.f32 %v1125, %v1128
  %1135 = vrot.lane.b32.xlu0 %v1133, 64
  %v1136 = vpop.permute.xlu0 %1135
  %v1138 = vadd.f32 %v1132, %v1136
  %v1139 = vtanh.pop %v1138
  %v1140 = vmul.f32 %v1127, %v1139
  %v1142 = vrot.slane %v1140, 1
  %1143 = vrot.lane.b32.xlu0 %v1142, 64
  %v1144 = vpop.permute.xlu0 %1143
  %v1145 = vsel %vm158, %v1144, 0
  %1147 = vmatprep.subr.mxu0 %v15
  %1148 = vmatpush1.msra.mxu0 %v14
  %1149 = vmatprep.subr.mxu0 %v17
  %1150 = vmatpush1.msra.mxu0 %v16
  %1151 = vmatprep.subr.mxu0 %v19
  %1152 = vmatpush1.msra.mxu0 %v18
  %1153 = vmatprep.subr.mxu0 %v21
  %1154 = vmatpush1.msra.mxu0 %v20
  %1155 = vmatprep.subr.mxu0 %v23
  %1156 = vmatpush1.msra.mxu0 %v22
  %1157 = vmatprep.subr.mxu0 %v25
  %1158 = vmatpush1.msra.mxu0 %v24
  %1159 = vmatprep.subr.mxu0 %v27
  %1160 = vmatpush1.msra.mxu0 %v26
  %1161 = vmatprep.subr.mxu0 %v29
  %1162 = vmatpush1.msra.mxu0 %v28
  %1163 = vmatprep.subr.mxu0 0.0
  %1164 = vmatpush1.msra.mxu0 0.0
  %1165 = vmatprep.subr.mxu0 0.0
  %1166 = vmatpush1.msra.mxu0 0.0
  %1167 = vmatprep.subr.mxu0 0.0
  %1168 = vmatpush1.msra.mxu0 0.0
  %1169 = vmatprep.subr.mxu0 0.0
  %1170 = vmatpush1.msra.mxu0 0.0
  %1171 = vmatprep.subr.mxu0 0.0
  %1172 = vmatpush1.msra.mxu0 0.0
  %1173 = vmatprep.subr.mxu0 0.0
  %1174 = vmatpush1.msra.mxu0 0.0
  %1175 = vmatprep.subr.mxu0 0.0
  %1176 = vmatpush1.msra.mxu0 0.0
  %1177 = vmatprep.subr.mxu0 0.0
  %1178 = vmatpush1.msra.mxu0 0.0
  %1179 = vmatprep.subr.mxu0 0.0
  %1180 = vmatpush1.msra.mxu0 0.0
  %1181 = vmatprep.subr.mxu0 0.0
  %1182 = vmatpush1.msra.mxu0 0.0
  %1183 = vmatprep.subr.mxu0 0.0
  %1184 = vmatpush1.msra.mxu0 0.0
  %1185 = vmatprep.subr.mxu0 0.0
  %1186 = vmatpush1.msra.mxu0 0.0
  %1187 = vmatprep.subr.mxu0 0.0
  %1188 = vmatpush1.msra.mxu0 0.0
  %1189 = vmatprep.subr.mxu0 0.0
  %1190 = vmatpush1.msra.mxu0 0.0
  %1191 = vmatprep.subr.mxu0 0.0
  %1192 = vmatpush1.msra.mxu0 0.0
  %1193 = vmatprep.subr.mxu0 0.0
  %1194 = vmatpush1.msra.mxu0 0.0
  %1195 = vmatprep.subr.mxu0 0.0
  %1196 = vmatpush1.msra.mxu0 0.0
  %1197 = vmatprep.subr.mxu0 0.0
  %1198 = vmatpush1.msra.mxu0 0.0
  %1199 = vmatprep.subr.mxu0 0.0
  %1200 = vmatpush1.msra.mxu0 0.0
  %1201 = vmatprep.subr.mxu0 0.0
  %1202 = vmatpush1.msra.mxu0 0.0
  %1203 = vmatprep.subr.mxu0 0.0
  %1204 = vmatpush1.msra.mxu0 0.0
  %1205 = vmatprep.subr.mxu0 0.0
  %1206 = vmatpush1.msra.mxu0 0.0
  %1207 = vmatprep.subr.mxu0 0.0
  %1208 = vmatpush1.msra.mxu0 0.0
  %1209 = vmatprep.subr.mxu0 0.0
  %1210 = vmatpush1.msra.mxu0 0.0
  %1211 = vmatprep.mubr.f32.mxu0 0.0
  %1212 = vmatmul.mubr.f32.gmra.mrb[0].mxu0 %v1145
  %v1213 = vpop.f32.mrb[0].mxu0
  %v1214 = vadd.f32 0.0, %v1213
  %v1215 = vpop.f32.mrb[0].mxu0
  %v1216 = vadd.f32 0.0, %v1215
  %1217 = vdwg.mxu0
  %v1220 = vrot.slane %v1214, 6
  %v1221 = vrot.slane %v1216, 6
  %v1224 = vadd.f32 %v127, %v1220
  %v1225 = vadd.f32 %v129, %v1221
  %v1226 = vxor.u32 %v1224, 2147483648
  %v1227 = vxor.u32 %v1225, 2147483648
  %v1228 = vmul.f32 %v1226, 1.442695
  %v1229 = vpow.pop %v1228
  %v1230 = vmul.f32 %v1227, 1.442695
  %v1231 = vpow.pop %v1230
  %v1232 = vadd.f32 %v1229, 1.0
  %v1233 = vadd.f32 %v1231, 1.0
  %v1234 = vrcp.pop %v1232
  %v1235 = vmul.f32 1.0, %v1234
  %v1236 = vrcp.pop %v1233
  %v1237 = vmul.f32 1.0, %v1236
  %v1238 = vtanh.pop %v1225
  %v1240 = vrot.slane %v1138, 7
  %v1242 = vmul.f32 %v1235, %v1240
  %v1243 = vmul.f32 %v1235, %v1238
  %1245 = vrot.lane.b32.xlu0 %v1243, 64
  %v1246 = vpop.permute.xlu0 %1245
  %v1248 = vadd.f32 %v1242, %v1246
  %v1249 = vtanh.pop %v1248
  %v1250 = vmul.f32 %v1237, %v1249
  %v1252 = vrot.slane %v1250, 2
  %1253 = vrot.lane.b32.xlu0 %v1252, 64
  %v1254 = vpop.permute.xlu0 %1253
  %v1255 = vsel %vm158, %v1254, 0
  %1257 = vmatprep.subr.mxu0 %v15
  %1258 = vmatpush1.msra.mxu0 %v14
  %1259 = vmatprep.subr.mxu0 %v17
  %1260 = vmatpush1.msra.mxu0 %v16
  %1261 = vmatprep.subr.mxu0 %v19
  %1262 = vmatpush1.msra.mxu0 %v18
  %1263 = vmatprep.subr.mxu0 %v21
  %1264 = vmatpush1.msra.mxu0 %v20
  %1265 = vmatprep.subr.mxu0 %v23
  %1266 = vmatpush1.msra.mxu0 %v22
  %1267 = vmatprep.subr.mxu0 %v25
  %1268 = vmatpush1.msra.mxu0 %v24
  %1269 = vmatprep.subr.mxu0 %v27
  %1270 = vmatpush1.msra.mxu0 %v26
  %1271 = vmatprep.subr.mxu0 %v29
  %1272 = vmatpush1.msra.mxu0 %v28
  %1273 = vmatprep.subr.mxu0 0.0
  %1274 = vmatpush1.msra.mxu0 0.0
  %1275 = vmatprep.subr.mxu0 0.0
  %1276 = vmatpush1.msra.mxu0 0.0
  %1277 = vmatprep.subr.mxu0 0.0
  %1278 = vmatpush1.msra.mxu0 0.0
  %1279 = vmatprep.subr.mxu0 0.0
  %1280 = vmatpush1.msra.mxu0 0.0
  %1281 = vmatprep.subr.mxu0 0.0
  %1282 = vmatpush1.msra.mxu0 0.0
  %1283 = vmatprep.subr.mxu0 0.0
  %1284 = vmatpush1.msra.mxu0 0.0
  %1285 = vmatprep.subr.mxu0 0.0
  %1286 = vmatpush1.msra.mxu0 0.0
  %1287 = vmatprep.subr.mxu0 0.0
  %1288 = vmatpush1.msra.mxu0 0.0
  %1289 = vmatprep.subr.mxu0 0.0
  %1290 = vmatpush1.msra.mxu0 0.0
  %1291 = vmatprep.subr.mxu0 0.0
  %1292 = vmatpush1.msra.mxu0 0.0
  %1293 = vmatprep.subr.mxu0 0.0
  %1294 = vmatpush1.msra.mxu0 0.0
  %1295 = vmatprep.subr.mxu0 0.0
  %1296 = vmatpush1.msra.mxu0 0.0
  %1297 = vmatprep.subr.mxu0 0.0
  %1298 = vmatpush1.msra.mxu0 0.0
  %1299 = vmatprep.subr.mxu0 0.0
  %1300 = vmatpush1.msra.mxu0 0.0
  %1301 = vmatprep.subr.mxu0 0.0
  %1302 = vmatpush1.msra.mxu0 0.0
  %1303 = vmatprep.subr.mxu0 0.0
  %1304 = vmatpush1.msra.mxu0 0.0
  %1305 = vmatprep.subr.mxu0 0.0
  %1306 = vmatpush1.msra.mxu0 0.0
  %1307 = vmatprep.subr.mxu0 0.0
  %1308 = vmatpush1.msra.mxu0 0.0
  %1309 = vmatprep.subr.mxu0 0.0
  %1310 = vmatpush1.msra.mxu0 0.0
  %1311 = vmatprep.subr.mxu0 0.0
  %1312 = vmatpush1.msra.mxu0 0.0
  %1313 = vmatprep.subr.mxu0 0.0
  %1314 = vmatpush1.msra.mxu0 0.0
  %1315 = vmatprep.subr.mxu0 0.0
  %1316 = vmatpush1.msra.mxu0 0.0
  %1317 = vmatprep.subr.mxu0 0.0
  %1318 = vmatpush1.msra.mxu0 0.0
  %1319 = vmatprep.subr.mxu0 0.0
  %1320 = vmatpush1.msra.mxu0 0.0
  %1321 = vmatprep.mubr.f32.mxu0 0.0
  %1322 = vmatmul.mubr.f32.gmra.mrb[0].mxu0 %v1255
  %v1323 = vpop.f32.mrb[0].mxu0
  %v1324 = vadd.f32 0.0, %v1323
  %v1325 = vpop.f32.mrb[0].mxu0
  %v1326 = vadd.f32 0.0, %v1325
  %1327 = vdwg.mxu0
  %v1330 = vrot.slane %v1324, 5
  %v1331 = vrot.slane %v1326, 5
  %v1334 = vadd.f32 %v127, %v1330
  %v1335 = vadd.f32 %v129, %v1331
  %v1336 = vxor.u32 %v1334, 2147483648
  %v1337 = vxor.u32 %v1335, 2147483648
  %v1338 = vmul.f32 %v1336, 1.442695
  %v1339 = vpow.pop %v1338
  %v1340 = vmul.f32 %v1337, 1.442695
  %v1341 = vpow.pop %v1340
  %v1342 = vadd.f32 %v1339, 1.0
  %v1343 = vadd.f32 %v1341, 1.0
  %v1344 = vrcp.pop %v1342
  %v1345 = vmul.f32 1.0, %v1344
  %v1346 = vrcp.pop %v1343
  %v1347 = vmul.f32 1.0, %v1346
  %v1348 = vtanh.pop %v1335
  %v1350 = vrot.slane %v1248, 7
  %v1352 = vmul.f32 %v1345, %v1350
  %v1353 = vmul.f32 %v1345, %v1348
  %1355 = vrot.lane.b32.xlu0 %v1353, 64
  %v1356 = vpop.permute.xlu0 %1355
  %v1358 = vadd.f32 %v1352, %v1356
  %v1359 = vtanh.pop %v1358
  %v1360 = vmul.f32 %v1347, %v1359
  %v1362 = vrot.slane %v1360, 3
  %1363 = vrot.lane.b32.xlu0 %v1362, 64
  %v1364 = vpop.permute.xlu0 %1363
  %v1365 = vsel %vm158, %v1364, 0
  %1367 = vmatprep.subr.mxu0 %v15
  %1368 = vmatpush1.msra.mxu0 %v14
  %1369 = vmatprep.subr.mxu0 %v17
  %1370 = vmatpush1.msra.mxu0 %v16
  %1371 = vmatprep.subr.mxu0 %v19
  %1372 = vmatpush1.msra.mxu0 %v18
  %1373 = vmatprep.subr.mxu0 %v21
  %1374 = vmatpush1.msra.mxu0 %v20
  %1375 = vmatprep.subr.mxu0 %v23
  %1376 = vmatpush1.msra.mxu0 %v22
  %1377 = vmatprep.subr.mxu0 %v25
  %1378 = vmatpush1.msra.mxu0 %v24
  %1379 = vmatprep.subr.mxu0 %v27
  %1380 = vmatpush1.msra.mxu0 %v26
  %1381 = vmatprep.subr.mxu0 %v29
  %1382 = vmatpush1.msra.mxu0 %v28
  %1383 = vmatprep.subr.mxu0 0.0
  %1384 = vmatpush1.msra.mxu0 0.0
  %1385 = vmatprep.subr.mxu0 0.0
  %1386 = vmatpush1.msra.mxu0 0.0
  %1387 = vmatprep.subr.mxu0 0.0
  %1388 = vmatpush1.msra.mxu0 0.0
  %1389 = vmatprep.subr.mxu0 0.0
  %1390 = vmatpush1.msra.mxu0 0.0
  %1391 = vmatprep.subr.mxu0 0.0
  %1392 = vmatpush1.msra.mxu0 0.0
  %1393 = vmatprep.subr.mxu0 0.0
  %1394 = vmatpush1.msra.mxu0 0.0
  %1395 = vmatprep.subr.mxu0 0.0
  %1396 = vmatpush1.msra.mxu0 0.0
  %1397 = vmatprep.subr.mxu0 0.0
  %1398 = vmatpush1.msra.mxu0 0.0
  %1399 = vmatprep.subr.mxu0 0.0
  %1400 = vmatpush1.msra.mxu0 0.0
  %1401 = vmatprep.subr.mxu0 0.0
  %1402 = vmatpush1.msra.mxu0 0.0
  %1403 = vmatprep.subr.mxu0 0.0
  %1404 = vmatpush1.msra.mxu0 0.0
  %1405 = vmatprep.subr.mxu0 0.0
  %1406 = vmatpush1.msra.mxu0 0.0
  %1407 = vmatprep.subr.mxu0 0.0
  %1408 = vmatpush1.msra.mxu0 0.0
  %1409 = vmatprep.subr.mxu0 0.0
  %1410 = vmatpush1.msra.mxu0 0.0
  %1411 = vmatprep.subr.mxu0 0.0
  %1412 = vmatpush1.msra.mxu0 0.0
  %1413 = vmatprep.subr.mxu0 0.0
  %1414 = vmatpush1.msra.mxu0 0.0
  %1415 = vmatprep.subr.mxu0 0.0
  %1416 = vmatpush1.msra.mxu0 0.0
  %1417 = vmatprep.subr.mxu0 0.0
  %1418 = vmatpush1.msra.mxu0 0.0
  %1419 = vmatprep.subr.mxu0 0.0
  %1420 = vmatpush1.msra.mxu0 0.0
  %1421 = vmatprep.subr.mxu0 0.0
  %1422 = vmatpush1.msra.mxu0 0.0
  %1423 = vmatprep.subr.mxu0 0.0
  %1424 = vmatpush1.msra.mxu0 0.0
  %1425 = vmatprep.subr.mxu0 0.0
  %1426 = vmatpush1.msra.mxu0 0.0
  %1427 = vmatprep.subr.mxu0 0.0
  %1428 = vmatpush1.msra.mxu0 0.0
  %1429 = vmatprep.subr.mxu0 0.0
  %1430 = vmatpush1.msra.mxu0 0.0
  %1431 = vmatprep.mubr.f32.mxu0 0.0
  %1432 = vmatmul.mubr.f32.gmra.mrb[0].mxu0 %v1365
  %v1433 = vpop.f32.mrb[0].mxu0
  %v1434 = vadd.f32 0.0, %v1433
  %v1435 = vpop.f32.mrb[0].mxu0
  %v1436 = vadd.f32 0.0, %v1435
  %1437 = vdwg.mxu0
  %v1440 = vrot.slane %v1434, 4
  %v1441 = vrot.slane %v1436, 4
  %v1444 = vadd.f32 %v127, %v1440
  %v1445 = vadd.f32 %v129, %v1441
  %v1446 = vxor.u32 %v1444, 2147483648
  %v1447 = vxor.u32 %v1445, 2147483648
  %v1448 = vmul.f32 %v1446, 1.442695
  %v1449 = vpow.pop %v1448
  %v1450 = vmul.f32 %v1447, 1.442695
  %v1451 = vpow.pop %v1450
  %v1452 = vadd.f32 %v1449, 1.0
  %v1453 = vadd.f32 %v1451, 1.0
  %v1454 = vrcp.pop %v1452
  %v1455 = vmul.f32 1.0, %v1454
  %v1456 = vrcp.pop %v1453
  %v1457 = vmul.f32 1.0, %v1456
  %v1458 = vtanh.pop %v1445
  %v1460 = vrot.slane %v1358, 7
  %v1462 = vmul.f32 %v1455, %v1460
  %v1463 = vmul.f32 %v1455, %v1458
  %1465 = vrot.lane.b32.xlu0 %v1463, 64
  %v1466 = vpop.permute.xlu0 %1465
  %v1468 = vadd.f32 %v1462, %v1466
  %v1469 = vtanh.pop %v1468
  %v1470 = vmul.f32 %v1457, %v1469
  %v1472 = vrot.slane %v1470, 4
  %1473 = vrot.lane.b32.xlu0 %v1472, 64
  %v1474 = vpop.permute.xlu0 %1473
  %v1475 = vsel %vm158, %v1474, 0
  %1477 = vmatprep.subr.mxu0 %v15
  %1478 = vmatpush1.msra.mxu0 %v14
  %1479 = vmatprep.subr.mxu0 %v17
  %1480 = vmatpush1.msra.mxu0 %v16
  %1481 = vmatprep.subr.mxu0 %v19
  %1482 = vmatpush1.msra.mxu0 %v18
  %1483 = vmatprep.subr.mxu0 %v21
  %1484 = vmatpush1.msra.mxu0 %v20
  %1485 = vmatprep.subr.mxu0 %v23
  %1486 = vmatpush1.msra.mxu0 %v22
  %1487 = vmatprep.subr.mxu0 %v25
  %1488 = vmatpush1.msra.mxu0 %v24
  %1489 = vmatprep.subr.mxu0 %v27
  %1490 = vmatpush1.msra.mxu0 %v26
  %1491 = vmatprep.subr.mxu0 %v29
  %1492 = vmatpush1.msra.mxu0 %v28
  %1493 = vmatprep.subr.mxu0 0.0
  %1494 = vmatpush1.msra.mxu0 0.0
  %1495 = vmatprep.subr.mxu0 0.0
  %1496 = vmatpush1.msra.mxu0 0.0
  %1497 = vmatprep.subr.mxu0 0.0
  %1498 = vmatpush1.msra.mxu0 0.0
  %1499 = vmatprep.subr.mxu0 0.0
  %1500 = vmatpush1.msra.mxu0 0.0
  %1501 = vmatprep.subr.mxu0 0.0
  %1502 = vmatpush1.msra.mxu0 0.0
  %1503 = vmatprep.subr.mxu0 0.0
  %1504 = vmatpush1.msra.mxu0 0.0
  %1505 = vmatprep.subr.mxu0 0.0
  %1506 = vmatpush1.msra.mxu0 0.0
  %1507 = vmatprep.subr.mxu0 0.0
  %1508 = vmatpush1.msra.mxu0 0.0
  %1509 = vmatprep.subr.mxu0 0.0
  %1510 = vmatpush1.msra.mxu0 0.0
  %1511 = vmatprep.subr.mxu0 0.0
  %1512 = vmatpush1.msra.mxu0 0.0
  %1513 = vmatprep.subr.mxu0 0.0
  %1514 = vmatpush1.msra.mxu0 0.0
  %1515 = vmatprep.subr.mxu0 0.0
  %1516 = vmatpush1.msra.mxu0 0.0
  %1517 = vmatprep.subr.mxu0 0.0
  %1518 = vmatpush1.msra.mxu0 0.0
  %1519 = vmatprep.subr.mxu0 0.0
  %1520 = vmatpush1.msra.mxu0 0.0
  %1521 = vmatprep.subr.mxu0 0.0
  %1522 = vmatpush1.msra.mxu0 0.0
  %1523 = vmatprep.subr.mxu0 0.0
  %1524 = vmatpush1.msra.mxu0 0.0
  %1525 = vmatprep.subr.mxu0 0.0
  %1526 = vmatpush1.msra.mxu0 0.0
  %1527 = vmatprep.subr.mxu0 0.0
  %1528 = vmatpush1.msra.mxu0 0.0
  %1529 = vmatprep.subr.mxu0 0.0
  %1530 = vmatpush1.msra.mxu0 0.0
  %1531 = vmatprep.subr.mxu0 0.0
  %1532 = vmatpush1.msra.mxu0 0.0
  %1533 = vmatprep.subr.mxu0 0.0
  %1534 = vmatpush1.msra.mxu0 0.0
  %1535 = vmatprep.subr.mxu0 0.0
  %1536 = vmatpush1.msra.mxu0 0.0
  %1537 = vmatprep.subr.mxu0 0.0
  %1538 = vmatpush1.msra.mxu0 0.0
  %1539 = vmatprep.subr.mxu0 0.0
  %1540 = vmatpush1.msra.mxu0 0.0
  %1541 = vmatprep.mubr.f32.mxu0 0.0
  %1542 = vmatmul.mubr.f32.gmra.mrb[0].mxu0 %v1475
  %v1543 = vpop.f32.mrb[0].mxu0
  %v1544 = vadd.f32 0.0, %v1543
  %v1545 = vpop.f32.mrb[0].mxu0
  %v1546 = vadd.f32 0.0, %v1545
  %1547 = vdwg.mxu0
  %v1550 = vrot.slane %v1544, 3
  %v1551 = vrot.slane %v1546, 3
  %v1554 = vadd.f32 %v127, %v1550
  %v1555 = vadd.f32 %v129, %v1551
  %v1556 = vxor.u32 %v1554, 2147483648
  %v1557 = vxor.u32 %v1555, 2147483648
  %v1558 = vmul.f32 %v1556, 1.442695
  %v1559 = vpow.pop %v1558
  %v1560 = vmul.f32 %v1557, 1.442695
  %v1561 = vpow.pop %v1560
  %v1562 = vadd.f32 %v1559, 1.0
  %v1563 = vadd.f32 %v1561, 1.0
  %v1564 = vrcp.pop %v1562
  %v1565 = vmul.f32 1.0, %v1564
  %v1566 = vrcp.pop %v1563
  %v1567 = vmul.f32 1.0, %v1566
  %v1568 = vtanh.pop %v1555
  %v1570 = vrot.slane %v1468, 7
  %v1572 = vmul.f32 %v1565, %v1570
  %v1573 = vmul.f32 %v1565, %v1568
  %1575 = vrot.lane.b32.xlu0 %v1573, 64
  %v1576 = vpop.permute.xlu0 %1575
  %v1578 = vadd.f32 %v1572, %v1576
  %v1579 = vtanh.pop %v1578
  %v1580 = vmul.f32 %v1567, %v1579
  %v1582 = vrot.slane %v1580, 5
  %1583 = vrot.lane.b32.xlu0 %v1582, 64
  %v1584 = vpop.permute.xlu0 %1583
  %v1585 = vsel %vm158, %v1584, 0
  %1587 = vmatprep.subr.mxu0 %v15
  %1588 = vmatpush1.msra.mxu0 %v14
  %1589 = vmatprep.subr.mxu0 %v17
  %1590 = vmatpush1.msra.mxu0 %v16
  %1591 = vmatprep.subr.mxu0 %v19
  %1592 = vmatpush1.msra.mxu0 %v18
  %1593 = vmatprep.subr.mxu0 %v21
  %1594 = vmatpush1.msra.mxu0 %v20
  %1595 = vmatprep.subr.mxu0 %v23
  %1596 = vmatpush1.msra.mxu0 %v22
  %1597 = vmatprep.subr.mxu0 %v25
  %1598 = vmatpush1.msra.mxu0 %v24
  %1599 = vmatprep.subr.mxu0 %v27
  %1600 = vmatpush1.msra.mxu0 %v26
  %1601 = vmatprep.subr.mxu0 %v29
  %1602 = vmatpush1.msra.mxu0 %v28
  %1603 = vmatprep.subr.mxu0 0.0
  %1604 = vmatpush1.msra.mxu0 0.0
  %1605 = vmatprep.subr.mxu0 0.0
  %1606 = vmatpush1.msra.mxu0 0.0
  %1607 = vmatprep.subr.mxu0 0.0
  %1608 = vmatpush1.msra.mxu0 0.0
  %1609 = vmatprep.subr.mxu0 0.0
  %1610 = vmatpush1.msra.mxu0 0.0
  %1611 = vmatprep.subr.mxu0 0.0
  %1612 = vmatpush1.msra.mxu0 0.0
  %1613 = vmatprep.subr.mxu0 0.0
  %1614 = vmatpush1.msra.mxu0 0.0
  %1615 = vmatprep.subr.mxu0 0.0
  %1616 = vmatpush1.msra.mxu0 0.0
  %1617 = vmatprep.subr.mxu0 0.0
  %1618 = vmatpush1.msra.mxu0 0.0
  %1619 = vmatprep.subr.mxu0 0.0
  %1620 = vmatpush1.msra.mxu0 0.0
  %1621 = vmatprep.subr.mxu0 0.0
  %1622 = vmatpush1.msra.mxu0 0.0
  %1623 = vmatprep.subr.mxu0 0.0
  %1624 = vmatpush1.msra.mxu0 0.0
  %1625 = vmatprep.subr.mxu0 0.0
  %1626 = vmatpush1.msra.mxu0 0.0
  %1627 = vmatprep.subr.mxu0 0.0
  %1628 = vmatpush1.msra.mxu0 0.0
  %1629 = vmatprep.subr.mxu0 0.0
  %1630 = vmatpush1.msra.mxu0 0.0
  %1631 = vmatprep.subr.mxu0 0.0
  %1632 = vmatpush1.msra.mxu0 0.0
  %1633 = vmatprep.subr.mxu0 0.0
  %1634 = vmatpush1.msra.mxu0 0.0
  %1635 = vmatprep.subr.mxu0 0.0
  %1636 = vmatpush1.msra.mxu0 0.0
  %1637 = vmatprep.subr.mxu0 0.0
  %1638 = vmatpush1.msra.mxu0 0.0
  %1639 = vmatprep.subr.mxu0 0.0
  %1640 = vmatpush1.msra.mxu0 0.0
  %1641 = vmatprep.subr.mxu0 0.0
  %1642 = vmatpush1.msra.mxu0 0.0
  %1643 = vmatprep.subr.mxu0 0.0
  %1644 = vmatpush1.msra.mxu0 0.0
  %1645 = vmatprep.subr.mxu0 0.0
  %1646 = vmatpush1.msra.mxu0 0.0
  %1647 = vmatprep.subr.mxu0 0.0
  %1648 = vmatpush1.msra.mxu0 0.0
  %1649 = vmatprep.subr.mxu0 0.0
  %1650 = vmatpush1.msra.mxu0 0.0
  %1651 = vmatprep.mubr.f32.mxu0 0.0
  %1652 = vmatmul.mubr.f32.gmra.mrb[0].mxu0 %v1585
  %v1653 = vpop.f32.mrb[0].mxu0
  %v1654 = vadd.f32 0.0, %v1653
  %v1655 = vpop.f32.mrb[0].mxu0
  %v1656 = vadd.f32 0.0, %v1655
  %1657 = vdwg.mxu0
  %v1660 = vrot.slane %v1654, 2
  %v1661 = vrot.slane %v1656, 2
  %v1664 = vadd.f32 %v127, %v1660
  %v1665 = vadd.f32 %v129, %v1661
  %v1666 = vxor.u32 %v1664, 2147483648
  %v1667 = vxor.u32 %v1665, 2147483648
  %v1668 = vmul.f32 %v1666, 1.442695
  %v1669 = vpow.pop %v1668
  %v1670 = vmul.f32 %v1667, 1.442695
  %v1671 = vpow.pop %v1670
  %v1672 = vadd.f32 %v1669, 1.0
  %v1673 = vadd.f32 %v1671, 1.0
  %v1674 = vrcp.pop %v1672
  %v1675 = vmul.f32 1.0, %v1674
  %v1676 = vrcp.pop %v1673
  %v1677 = vmul.f32 1.0, %v1676
  %v1678 = vtanh.pop %v1665
  %v1680 = vrot.slane %v1578, 7
  %v1682 = vmul.f32 %v1675, %v1680
  %v1683 = vmul.f32 %v1675, %v1678
  %1685 = vrot.lane.b32.xlu0 %v1683, 64
  %v1686 = vpop.permute.xlu0 %1685
  %v1688 = vadd.f32 %v1682, %v1686
  %v1689 = vtanh.pop %v1688
  %v1690 = vmul.f32 %v1677, %v1689
  %v1692 = vrot.slane %v1690, 6
  %1693 = vrot.lane.b32.xlu0 %v1692, 64
  %v1694 = vpop.permute.xlu0 %1693
  %v1695 = vsel %vm158, %v1694, 0
  %1697 = vmatprep.subr.mxu0 %v15
  %1698 = vmatpush1.msra.mxu0 %v14
  %1699 = vmatprep.subr.mxu0 %v17
  %1700 = vmatpush1.msra.mxu0 %v16
  %1701 = vmatprep.subr.mxu0 %v19
  %1702 = vmatpush1.msra.mxu0 %v18
  %1703 = vmatprep.subr.mxu0 %v21
  %1704 = vmatpush1.msra.mxu0 %v20
  %1705 = vmatprep.subr.mxu0 %v23
  %1706 = vmatpush1.msra.mxu0 %v22
  %1707 = vmatprep.subr.mxu0 %v25
  %1708 = vmatpush1.msra.mxu0 %v24
  %1709 = vmatprep.subr.mxu0 %v27
  %1710 = vmatpush1.msra.mxu0 %v26
  %1711 = vmatprep.subr.mxu0 %v29
  %1712 = vmatpush1.msra.mxu0 %v28
  %1713 = vmatprep.subr.mxu0 0.0
  %1714 = vmatpush1.msra.mxu0 0.0
  %1715 = vmatprep.subr.mxu0 0.0
  %1716 = vmatpush1.msra.mxu0 0.0
  %1717 = vmatprep.subr.mxu0 0.0
  %1718 = vmatpush1.msra.mxu0 0.0
  %1719 = vmatprep.subr.mxu0 0.0
  %1720 = vmatpush1.msra.mxu0 0.0
  %1721 = vmatprep.subr.mxu0 0.0
  %1722 = vmatpush1.msra.mxu0 0.0
  %1723 = vmatprep.subr.mxu0 0.0
  %1724 = vmatpush1.msra.mxu0 0.0
  %1725 = vmatprep.subr.mxu0 0.0
  %1726 = vmatpush1.msra.mxu0 0.0
  %1727 = vmatprep.subr.mxu0 0.0
  %1728 = vmatpush1.msra.mxu0 0.0
  %1729 = vmatprep.subr.mxu0 0.0
  %1730 = vmatpush1.msra.mxu0 0.0
  %1731 = vmatprep.subr.mxu0 0.0
  %1732 = vmatpush1.msra.mxu0 0.0
  %1733 = vmatprep.subr.mxu0 0.0
  %1734 = vmatpush1.msra.mxu0 0.0
  %1735 = vmatprep.subr.mxu0 0.0
  %1736 = vmatpush1.msra.mxu0 0.0
  %1737 = vmatprep.subr.mxu0 0.0
  %1738 = vmatpush1.msra.mxu0 0.0
  %1739 = vmatprep.subr.mxu0 0.0
  %1740 = vmatpush1.msra.mxu0 0.0
  %1741 = vmatprep.subr.mxu0 0.0
  %1742 = vmatpush1.msra.mxu0 0.0
  %1743 = vmatprep.subr.mxu0 0.0
  %1744 = vmatpush1.msra.mxu0 0.0
  %1745 = vmatprep.subr.mxu0 0.0
  %1746 = vmatpush1.msra.mxu0 0.0
  %1747 = vmatprep.subr.mxu0 0.0
  %1748 = vmatpush1.msra.mxu0 0.0
  %1749 = vmatprep.subr.mxu0 0.0
  %1750 = vmatpush1.msra.mxu0 0.0
  %1751 = vmatprep.subr.mxu0 0.0
  %1752 = vmatpush1.msra.mxu0 0.0
  %1753 = vmatprep.subr.mxu0 0.0
  %1754 = vmatpush1.msra.mxu0 0.0
  %1755 = vmatprep.subr.mxu0 0.0
  %1756 = vmatpush1.msra.mxu0 0.0
  %1757 = vmatprep.subr.mxu0 0.0
  %1758 = vmatpush1.msra.mxu0 0.0
  %1759 = vmatprep.subr.mxu0 0.0
  %1760 = vmatpush1.msra.mxu0 0.0
  %1761 = vmatprep.mubr.f32.mxu0 0.0
  %1762 = vmatmul.mubr.f32.gmra.mrb[0].mxu0 %v1695
  %v1763 = vpop.f32.mrb[0].mxu0
  %v1764 = vadd.f32 0.0, %v1763
  %v1765 = vpop.f32.mrb[0].mxu0
  %v1766 = vadd.f32 0.0, %v1765
  %1767 = vdwg.mxu0
  %v1770 = vrot.slane %v1764, 1
  %v1771 = vrot.slane %v1766, 1
  %v1774 = vadd.f32 %v127, %v1770
  %v1775 = vadd.f32 %v129, %v1771
  %v1776 = vxor.u32 %v1774, 2147483648
  %v1777 = vxor.u32 %v1775, 2147483648
  %v1778 = vmul.f32 %v1776, 1.442695
  %v1779 = vpow.pop %v1778
  %v1780 = vmul.f32 %v1777, 1.442695
  %v1781 = vpow.pop %v1780
  %v1782 = vadd.f32 %v1779, 1.0
  %v1783 = vadd.f32 %v1781, 1.0
  %v1784 = vrcp.pop %v1782
  %v1785 = vmul.f32 1.0, %v1784
  %v1786 = vrcp.pop %v1783
  %v1787 = vmul.f32 1.0, %v1786
  %v1788 = vtanh.pop %v1775
  %v1790 = vrot.slane %v1688, 7
  %v1792 = vmul.f32 %v1785, %v1790
  %v1793 = vmul.f32 %v1785, %v1788
  %1795 = vrot.lane.b32.xlu0 %v1793, 64
  %v1796 = vpop.permute.xlu0 %1795
  %v1798 = vadd.f32 %v1792, %v1796
  %v1799 = vtanh.pop %v1798
  %v1800 = vmul.f32 %v1787, %v1799
  %v1802 = vrot.slane %v1800, 7
  %1803 = vrot.lane.b32.xlu0 %v1802, 64
  %v1804 = vpop.permute.xlu0 %1803
  %v1805 = vsel %vm158, %v1804, 0
  %1807 = vmatprep.subr.mxu0 %v15
  %1808 = vmatpush1.msra.mxu0 %v14
  %1809 = vmatprep.subr.mxu0 %v17
  %1810 = vmatpush1.msra.mxu0 %v16
  %1811 = vmatprep.subr.mxu0 %v19
  %1812 = vmatpush1.msra.mxu0 %v18
  %1813 = vmatprep.subr.mxu0 %v21
  %1814 = vmatpush1.msra.mxu0 %v20
  %1815 = vmatprep.subr.mxu0 %v23
  %1816 = vmatpush1.msra.mxu0 %v22
  %1817 = vmatprep.subr.mxu0 %v25
  %1818 = vmatpush1.msra.mxu0 %v24
  %1819 = vmatprep.subr.mxu0 %v27
  %1820 = vmatpush1.msra.mxu0 %v26
  %1821 = vmatprep.subr.mxu0 %v29
  %1822 = vmatpush1.msra.mxu0 %v28
  %1823 = vmatprep.subr.mxu0 0.0
  %1824 = vmatpush1.msra.mxu0 0.0
  %1825 = vmatprep.subr.mxu0 0.0
  %1826 = vmatpush1.msra.mxu0 0.0
  %1827 = vmatprep.subr.mxu0 0.0
  %1828 = vmatpush1.msra.mxu0 0.0
  %1829 = vmatprep.subr.mxu0 0.0
  %1830 = vmatpush1.msra.mxu0 0.0
  %1831 = vmatprep.subr.mxu0 0.0
  %1832 = vmatpush1.msra.mxu0 0.0
  %1833 = vmatprep.subr.mxu0 0.0
  %1834 = vmatpush1.msra.mxu0 0.0
  %1835 = vmatprep.subr.mxu0 0.0
  %1836 = vmatpush1.msra.mxu0 0.0
  %1837 = vmatprep.subr.mxu0 0.0
  %1838 = vmatpush1.msra.mxu0 0.0
  %1839 = vmatprep.subr.mxu0 0.0
  %1840 = vmatpush1.msra.mxu0 0.0
  %1841 = vmatprep.subr.mxu0 0.0
  %1842 = vmatpush1.msra.mxu0 0.0
  %1843 = vmatprep.subr.mxu0 0.0
  %1844 = vmatpush1.msra.mxu0 0.0
  %1845 = vmatprep.subr.mxu0 0.0
  %1846 = vmatpush1.msra.mxu0 0.0
  %1847 = vmatprep.subr.mxu0 0.0
  %1848 = vmatpush1.msra.mxu0 0.0
  %1849 = vmatprep.subr.mxu0 0.0
  %1850 = vmatpush1.msra.mxu0 0.0
  %1851 = vmatprep.subr.mxu0 0.0
  %1852 = vmatpush1.msra.mxu0 0.0
  %1853 = vmatprep.subr.mxu0 0.0
  %1854 = vmatpush1.msra.mxu0 0.0
  %1855 = vmatprep.subr.mxu0 0.0
  %1856 = vmatpush1.msra.mxu0 0.0
  %1857 = vmatprep.subr.mxu0 0.0
  %1858 = vmatpush1.msra.mxu0 0.0
  %1859 = vmatprep.subr.mxu0 0.0
  %1860 = vmatpush1.msra.mxu0 0.0
  %1861 = vmatprep.subr.mxu0 0.0
  %1862 = vmatpush1.msra.mxu0 0.0
  %1863 = vmatprep.subr.mxu0 0.0
  %1864 = vmatpush1.msra.mxu0 0.0
  %1865 = vmatprep.subr.mxu0 0.0
  %1866 = vmatpush1.msra.mxu0 0.0
  %1867 = vmatprep.subr.mxu0 0.0
  %1868 = vmatpush1.msra.mxu0 0.0
  %1869 = vmatprep.subr.mxu0 0.0
  %1870 = vmatpush1.msra.mxu0 0.0
  %1871 = vmatprep.mubr.f32.mxu0 0.0
  %1872 = vmatmul.mubr.f32.gmra.mrb[0].mxu0 %v1805
  %v1873 = vpop.f32.mrb[0].mxu0
  %v1874 = vadd.f32 0.0, %v1873
  %v1875 = vpop.f32.mrb[0].mxu0
  %v1876 = vadd.f32 0.0, %v1875
  %1877 = vdwg.mxu0
  %v1880 = vcombine.low %v1874, %v1876
  %v1882 = vunpack.c.l.s4 1966171168
  %v1883 = vunpack.c.0.s8 %v1882
  %v1884 = vlaneseq
  %v1885 = vshrl.u32 %v1884, 7
  %v1886 = vsub.s32 %v1883, %v1885
  %v1887 = vrot.slane %v1880, %v1886
  %v1889 = vunpack.c.l.s4 1966171168
  %v1890 = vunpack.c.0.s8 %v1889
  %v1891 = vlaneseq
  %v1892 = vshrl.u32 %v1891, 7
  %v1893 = vsub.s32 %v1890, %v1892
  %v1894 = vrot.slane %v1887, %v1893
  %v1896 = vadd.f32 %v31, %v1894
  %v1897 = vxor.u32 %v1896, 2147483648
  %v1898 = vmul.f32 %v1897, 1.442695
  %v1899 = vpow.pop %v1898
  %v1900 = vadd.f32 %v1899, 1.0
  %v1901 = vrcp.pop %v1900
  %v1902 = vmul.f32 1.0, %v1901
  %v1904 = vrot.slane %v1896, 1
  %v1906 = vtanh.pop %v1904
  %v1908 = vcombine.high %v1798, %v1798
  %v1910 = vunpack.c.l.s4 1966171168
  %v1911 = vunpack.c.0.s8 %v1910
  %v1912 = vlaneseq
  %v1913 = vshrl.u32 %v1912, 7
  %v1914 = vsub.s32 %v1911, %v1913
  %v1915 = vrot.slane %v1908, %v1914
  %v1916 = vcombine.high %v1915, %v1915
  %v1918 = vunpack.c.l.s4 1966171168
  %v1919 = vunpack.c.0.s8 %v1918
  %v1920 = vlaneseq
  %v1921 = vshrl.u32 %v1920, 7
  %v1922 = vsub.s32 %v1919, %v1921
  %v1923 = vrot.slane %v1916, %v1922
  %v1924 = vcombine.high %v1923, %v1923
  %v1926 = vmul.f32 %v1902, %v1924
  %v1927 = vmul.f32 %v1902, %v1906
  %1929 = vrot.lane.b32.xlu0 %v1927, 64
  %v1930 = vpop.permute.xlu0 %1929
  %v1932 = vadd.f32 %v1926, %v1930
  %v1933 = vtanh.pop %v1932
  %1935 = vrot.lane.b32.xlu0 %v1902, 64
  %v1936 = vpop.permute.xlu0 %1935
  %v1937 = vrot.slane %v1936, 1
  %1940 = vrot.lane.b32.xlu0 %v1933, 64
  %v1941 = vpop.permute.xlu0 %1940
  %v1943 = vmul.f32 %v1937, %v1941
  %v1945 = vrot.slane %v377, 1
  %v1947 = vrot.slane %v487, 1
  %v1949 = vrot.slane %v597, 1
  %v1951 = vrot.slane %v707, 1
  %v1953 = vrot.slane %v817, 1
  %v1955 = vrot.slane %v927, 1
  %v1957 = vrot.slane %v1031, 1
  %v1960 = vrot.slane %v1250, 1
  %v1962 = vrot.slane %v1360, 1
  %v1964 = vrot.slane %v1470, 1
  %v1966 = vrot.slane %v1580, 1
  %v1968 = vrot.slane %v1690, 1
  %v1970 = vrot.slane %v1800, 1
  %v1973 = vlaneseq
  %v1974 = vshrl.u32 %v1973, 7
  %v1975 = vsub.s32 0, %v1974
  %v1976 = vrot.slane %v1943, %v1975
  %1977 = vrot.lane.b32.xlu0 %v1976, 64
  %v1978 = vpop.permute.xlu0 %1977
  %vm1980 = vcmask 1040384
  %v1981 = vsel %vm1980, %v269, %v1945
  %vm1982 = vcmask 1041408
  %v1983 = vsel %vm1982, %v1981, %v1947
  %vm1984 = vcmask 1042432
  %v1985 = vsel %vm1984, %v1983, %v1949
  %vm1986 = vcmask 1043456
  %v1987 = vsel %vm1986, %v1985, %v1951
  %vm1988 = vcmask 1044480
  %v1989 = vsel %vm1988, %v1987, %v1953
  %vm1990 = vcmask 1045504
  %v1991 = vsel %vm1990, %v1989, %v1955
  %vm1992 = vcmask 1046528
  %v1993 = vsel %vm1992, %v1991, %v1957
  %v1994 = vsel %vm1980, %v1142, %v1960
  %v1995 = vsel %vm1982, %v1994, %v1962
  %v1996 = vsel %vm1984, %v1995, %v1964
  %v1997 = vsel %vm1986, %v1996, %v1966
  %v1998 = vsel %vm1988, %v1997, %v1968
  %v1999 = vsel %vm1990, %v1998, %v1970
  %v2000 = vsel %vm1992, %v1999, %v1978
  %v2001 = vld [vmem:[%s2] sm:$0xff]
  %v2002 = vld [vmem:[%s2 + $0x8] sm:$0xff]
  %v2003 = vld [vmem:[%s2 + $0x10] sm:$0xff]
  %v2004 = vld [vmem:[%s2 + $0x18] sm:$0xff]
  %v2005 = vld [vmem:[%s2 + $0x20] sm:$0x1]
  %v2006 = vlaneseq
  %v2007 = vshrl.u32 %v2006, 7
  %v2008 = vsub.s32 0, %v2007
  %v2009 = vrot.slane %v2005, %v2008
  %2012 = vrot.lane.b32.xlu0 %v1993, 64
  %v2013 = vpop.permute.xlu0 %2012
  %2014 = vrot.lane.b32.xlu0 %v2000, 64
  %v2015 = vpop.permute.xlu0 %2014
  %v2016 = vsel %vm155, %v2013, 0
  %v2018 = vsel %vm155, %v2015, 0
  %2020 = vmatprep.subr.mxu0 0.0
  %2021 = vmatpush1.msra.mxu0 %v2001
  %2022 = vmatprep.subr.mxu0 0.0
  %2023 = vmatpush1.msra.mxu0 %v2002
  %2024 = vmatprep.subr.mxu0 0.0
  %2025 = vmatpush1.msra.mxu0 %v2003
  %2026 = vmatprep.subr.mxu0 0.0
  %2027 = vmatpush1.msra.mxu0 %v2004
  %2028 = vmatprep.subr.mxu0 0.0
  %2029 = vmatpush1.msra.mxu0 0.0
  %2030 = vmatprep.subr.mxu0 0.0
  %2031 = vmatpush1.msra.mxu0 0.0
  %2032 = vmatprep.subr.mxu0 0.0
  %2033 = vmatpush1.msra.mxu0 0.0
  %2034 = vmatprep.subr.mxu0 0.0
  %2035 = vmatpush1.msra.mxu0 0.0
  %2036 = vmatprep.subr.mxu0 0.0
  %2037 = vmatpush1.msra.mxu0 0.0
  %2038 = vmatprep.subr.mxu0 0.0
  %2039 = vmatpush1.msra.mxu0 0.0
  %2040 = vmatprep.subr.mxu0 0.0
  %2041 = vmatpush1.msra.mxu0 0.0
  %2042 = vmatprep.subr.mxu0 0.0
  %2043 = vmatpush1.msra.mxu0 0.0
  %2044 = vmatprep.subr.mxu0 0.0
  %2045 = vmatpush1.msra.mxu0 0.0
  %2046 = vmatprep.subr.mxu0 0.0
  %2047 = vmatpush1.msra.mxu0 0.0
  %2048 = vmatprep.subr.mxu0 0.0
  %2049 = vmatpush1.msra.mxu0 0.0
  %2050 = vmatprep.subr.mxu0 0.0
  %2051 = vmatpush1.msra.mxu0 0.0
  %2052 = vmatprep.subr.mxu0 0.0
  %2053 = vmatpush1.msra.mxu0 0.0
  %2054 = vmatprep.subr.mxu0 0.0
  %2055 = vmatpush1.msra.mxu0 0.0
  %2056 = vmatprep.subr.mxu0 0.0
  %2057 = vmatpush1.msra.mxu0 0.0
  %2058 = vmatprep.subr.mxu0 0.0
  %2059 = vmatpush1.msra.mxu0 0.0
  %2060 = vmatprep.subr.mxu0 0.0
  %2061 = vmatpush1.msra.mxu0 0.0
  %2062 = vmatprep.subr.mxu0 0.0
  %2063 = vmatpush1.msra.mxu0 0.0
  %2064 = vmatprep.subr.mxu0 0.0
  %2065 = vmatpush1.msra.mxu0 0.0
  %2066 = vmatprep.subr.mxu0 0.0
  %2067 = vmatpush1.msra.mxu0 0.0
  %2068 = vmatprep.subr.mxu0 0.0
  %2069 = vmatpush1.msra.mxu0 0.0
  %2070 = vmatprep.subr.mxu0 0.0
  %2071 = vmatpush1.msra.mxu0 0.0
  %2072 = vmatprep.subr.mxu0 0.0
  %2073 = vmatpush1.msra.mxu0 0.0
  %2074 = vmatprep.subr.mxu0 0.0
  %2075 = vmatpush1.msra.mxu0 0.0
  %2076 = vmatprep.subr.mxu0 0.0
  %2077 = vmatpush1.msra.mxu0 0.0
  %2078 = vmatprep.subr.mxu0 0.0
  %2079 = vmatpush1.msra.mxu0 0.0
  %2080 = vmatprep.subr.mxu0 0.0
  %2081 = vmatpush1.msra.mxu0 0.0
  %2082 = vmatprep.subr.mxu0 0.0
  %2083 = vmatpush1.msra.mxu0 0.0
  %2084 = vmatprep.mubr.f32.mxu0 0.0
  %2085 = vmatmul.mubr.f32.gmra.mrb[0].mxu0 %v2016
  %v2086 = vpop.f32.mrb[0].mxu0
  %v2087 = vadd.f32 %v2009, %v2086
  %v2088 = vpop.f32.mrb[0].mxu0
  %2089 = vmatprep.mubr.f32.mxu0 0.0
  %2090 = vmatmul.mubr.f32.gmra.mrb[0].mxu0 %v2018
  %v2091 = vpop.f32.mrb[0].mxu0
  %v2092 = vadd.f32 %v2009, %v2091
  %v2093 = vpop.f32.mrb[0].mxu0
  %2094 = vdwg.mxu0
  %vm2095 = vcmp.gt.f32.partialorder %v2087, 0.0
  %vm2096 = vcmp.gt.f32.partialorder %v2092, 0.0
  %v2097 = vmul.f32 %v2087, 0.01
  %v2098 = vmul.f32 %v2092, 0.01
  %v2099 = vsel %vm2095, %v2087, %v2097
  %v2100 = vsel %vm2096, %v2092, %v2098
  %vm2101 = vcmask 130048
  %v2102 = vsel %vm2101, %v2099, 0.0
  %v2103 = vsel %vm2101, %v2100, 0.0
  %v2104 = vadd.f32 %v2102, %v2103
  %v2105 = vrot.slane %v2104, 4
  %v2106 = vadd.f32 %v2104, %v2105
  %v2107 = vrot.slane %v2106, 2
  %v2108 = vadd.f32 %v2106, %v2107
  %v2109 = vrot.slane %v2108, 1
  %v2110 = vadd.f32 %v2108, %v2109
  %v2111 = vrcp.pop 16.0
  %v2112 = vmul.f32 %v2110, %v2111
  %v2113 = vsub.f32 %v2099, %v2112
  %v2114 = vsub.f32 %v2100, %v2112
  %v2115 = vmul.f32 %v2113, %v2113
  %v2116 = vmul.f32 %v2114, %v2114
  %v2117 = vsel %vm2101, %v2115, 0.0
  %v2118 = vsel %vm2101, %v2116, 0.0
  %v2119 = vadd.f32 %v2117, %v2118
  %v2120 = vrot.slane %v2119, 4
  %v2121 = vadd.f32 %v2119, %v2120
  %v2122 = vrot.slane %v2121, 2
  %v2123 = vadd.f32 %v2121, %v2122
  %v2124 = vrot.slane %v2123, 1
  %v2125 = vadd.f32 %v2123, %v2124
  %v2126 = vmul.f32 %v2125, %v2111
  %v2127 = vadd.f32 %v2126, 1e-05
  %v2128 = vrsqrt.pop %v2127
  %v2129 = vmul.f32 %v2113, %v2128
  %v2130 = vmul.f32 %v2114, %v2128
  %v2131 = vld [vmem:[%s2 + $0x21] sm:$0x1]
  %v2132 = vlaneseq
  %v2133 = vshrl.u32 %v2132, 7
  %v2134 = vsub.s32 0, %v2133
  %v2135 = vrot.slane %v2131, %v2134
  %v2136 = vmul.f32 %v2129, %v2135
  %v2137 = vmul.f32 %v2130, %v2135
  %v2138 = vld [vmem:[%s2 + $0x22] sm:$0x1]
  %v2139 = vlaneseq
  %v2140 = vshrl.u32 %v2139, 7
  %v2141 = vsub.s32 0, %v2140
  %v2142 = vrot.slane %v2138, %v2141
  %v2143 = vadd.f32 %v2136, %v2142
  %v2144 = vadd.f32 %v2137, %v2142
  %v2145 = vld [vmem:[%s2 + $0x23] sm:$0xff]
  %v2146 = vld [vmem:[%s2 + $0x2b] sm:$0xff]
  %v2147 = vld [vmem:[%s2 + $0x33] sm:$0x1]
  %v2148 = vlaneseq
  %v2149 = vshrl.u32 %v2148, 7
  %v2150 = vsub.s32 0, %v2149
  %v2151 = vrot.slane %v2147, %v2150
  %v2153 = vsel %vm2101, %v2143, 0
  %v2156 = vsel %vm2101, %v2144, 0
  %2158 = vmatprep.subr.mxu0 0.0
  %2159 = vmatpush1.msra.mxu0 %v2145
  %2160 = vmatprep.subr.mxu0 0.0
  %2161 = vmatpush1.msra.mxu0 %v2146
  %2162 = vmatprep.subr.mxu0 0.0
  %2163 = vmatpush1.msra.mxu0 0.0
  %2164 = vmatprep.subr.mxu0 0.0
  %2165 = vmatpush1.msra.mxu0 0.0
  %2166 = vmatprep.subr.mxu0 0.0
  %2167 = vmatpush1.msra.mxu0 0.0
  %2168 = vmatprep.subr.mxu0 0.0
  %2169 = vmatpush1.msra.mxu0 0.0
  %2170 = vmatprep.subr.mxu0 0.0
  %2171 = vmatpush1.msra.mxu0 0.0
  %2172 = vmatprep.subr.mxu0 0.0
  %2173 = vmatpush1.msra.mxu0 0.0
  %2174 = vmatprep.subr.mxu0 0.0
  %2175 = vmatpush1.msra.mxu0 0.0
  %2176 = vmatprep.subr.mxu0 0.0
  %2177 = vmatpush1.msra.mxu0 0.0
  %2178 = vmatprep.subr.mxu0 0.0
  %2179 = vmatpush1.msra.mxu0 0.0
  %2180 = vmatprep.subr.mxu0 0.0
  %2181 = vmatpush1.msra.mxu0 0.0
  %2182 = vmatprep.subr.mxu0 0.0
  %2183 = vmatpush1.msra.mxu0 0.0
  %2184 = vmatprep.subr.mxu0 0.0
  %2185 = vmatpush1.msra.mxu0 0.0
  %2186 = vmatprep.subr.mxu0 0.0
  %2187 = vmatpush1.msra.mxu0 0.0
  %2188 = vmatprep.subr.mxu0 0.0
  %2189 = vmatpush1.msra.mxu0 0.0
  %2190 = vmatprep.subr.mxu0 0.0
  %2191 = vmatpush1.msra.mxu0 0.0
  %2192 = vmatprep.subr.mxu0 0.0
  %2193 = vmatpush1.msra.mxu0 0.0
  %2194 = vmatprep.subr.mxu0 0.0
  %2195 = vmatpush1.msra.mxu0 0.0
  %2196 = vmatprep.subr.mxu0 0.0
  %2197 = vmatpush1.msra.mxu0 0.0
  %2198 = vmatprep.subr.mxu0 0.0
  %2199 = vmatpush1.msra.mxu0 0.0
  %2200 = vmatprep.subr.mxu0 0.0
  %2201 = vmatpush1.msra.mxu0 0.0
  %2202 = vmatprep.subr.mxu0 0.0
  %2203 = vmatpush1.msra.mxu0 0.0
  %2204 = vmatprep.subr.mxu0 0.0
  %2205 = vmatpush1.msra.mxu0 0.0
  %2206 = vmatprep.subr.mxu0 0.0
  %2207 = vmatpush1.msra.mxu0 0.0
  %2208 = vmatprep.subr.mxu0 0.0
  %2209 = vmatpush1.msra.mxu0 0.0
  %2210 = vmatprep.subr.mxu0 0.0
  %2211 = vmatpush1.msra.mxu0 0.0
  %2212 = vmatprep.subr.mxu0 0.0
  %2213 = vmatpush1.msra.mxu0 0.0
  %2214 = vmatprep.subr.mxu0 0.0
  %2215 = vmatpush1.msra.mxu0 0.0
  %2216 = vmatprep.subr.mxu0 0.0
  %2217 = vmatpush1.msra.mxu0 0.0
  %2218 = vmatprep.subr.mxu0 0.0
  %2219 = vmatpush1.msra.mxu0 0.0
  %2220 = vmatprep.subr.mxu0 0.0
  %2221 = vmatpush1.msra.mxu0 0.0
  %2222 = vmatprep.mubr.f32.mxu0 0.0
  %2223 = vmatmul.mubr.f32.gmra.mrb[0].mxu0 %v2153
  %v2224 = vpop.f32.mrb[0].mxu0
  %v2225 = vadd.f32 %v2151, %v2224
  %v2226 = vpop.f32.mrb[0].mxu0
  %2227 = vmatprep.mubr.f32.mxu0 0.0
  %2228 = vmatmul.mubr.f32.gmra.mrb[0].mxu0 %v2156
  %v2229 = vpop.f32.mrb[0].mxu0
  %v2230 = vadd.f32 %v2151, %v2229
  %v2231 = vpop.f32.mrb[0].mxu0
  %2232 = vdwg.mxu0
  %vm2233 = vcmp.gt.f32.partialorder %v2225, 0.0
  %vm2234 = vcmp.gt.f32.partialorder %v2230, 0.0
  %v2235 = vmul.f32 %v2225, 0.01
  %v2236 = vmul.f32 %v2230, 0.01
  %v2237 = vsel %vm2233, %v2225, %v2235
  %v2238 = vsel %vm2234, %v2230, %v2236
  %v2239 = vsel %vm47, %v2237, 0.0
  %v2240 = vsel %vm47, %v2238, 0.0
  %v2241 = vadd.f32 %v2239, %v2240
  %v2242 = vrot.slane %v2241, 4
  %v2243 = vadd.f32 %v2241, %v2242
  %v2244 = vrot.slane %v2243, 2
  %v2245 = vadd.f32 %v2243, %v2244
  %v2246 = vrot.slane %v2245, 1
  %v2247 = vadd.f32 %v2245, %v2246
  %v2248 = vmul.f32 %v2247, %v2111
  %v2249 = vsub.f32 %v2237, %v2248
  %v2250 = vsub.f32 %v2238, %v2248
  %v2251 = vmul.f32 %v2249, %v2249
  %v2252 = vmul.f32 %v2250, %v2250
  %v2253 = vsel %vm47, %v2251, 0.0
  %v2254 = vsel %vm47, %v2252, 0.0
  %v2255 = vadd.f32 %v2253, %v2254
  %v2256 = vrot.slane %v2255, 4
  %v2257 = vadd.f32 %v2255, %v2256
  %v2258 = vrot.slane %v2257, 2
  %v2259 = vadd.f32 %v2257, %v2258
  %v2260 = vrot.slane %v2259, 1
  %v2261 = vadd.f32 %v2259, %v2260
  %v2262 = vmul.f32 %v2261, %v2111
  %v2263 = vadd.f32 %v2262, 1e-05
  %v2264 = vrsqrt.pop %v2263
  %v2265 = vmul.f32 %v2249, %v2264
  %v2266 = vmul.f32 %v2250, %v2264
  %v2267 = vld [vmem:[%s2 + $0x34] sm:$0x1]
  %v2268 = vlaneseq
  %v2269 = vshrl.u32 %v2268, 7
  %v2270 = vsub.s32 0, %v2269
  %v2271 = vrot.slane %v2267, %v2270
  %v2272 = vmul.f32 %v2265, %v2271
  %v2273 = vmul.f32 %v2266, %v2271
  %v2274 = vld [vmem:[%s2 + $0x35] sm:$0x1]
  %v2275 = vlaneseq
  %v2276 = vshrl.u32 %v2275, 7
  %v2277 = vsub.s32 0, %v2276
  %v2278 = vrot.slane %v2274, %v2277
  %v2279 = vadd.f32 %v2272, %v2278
  %v2280 = vadd.f32 %v2273, %v2278
  %v2281 = vld [vmem:[%s2 + $0x36] sm:$0xff]
  %v2282 = vld [vmem:[%s2 + $0x3e] sm:$0x1]
  %v2283 = vlaneseq
  %v2284 = vshrl.u32 %v2283, 7
  %v2285 = vsub.s32 0, %v2284
  %v2286 = vrot.slane %v2282, %v2285
  %v2288 = vsel %vm47, %v2279, 0
  %v2291 = vsel %vm47, %v2280, 0
  %2293 = vmatprep.subr.mxu0 0.0
  %2294 = vmatpush1.msra.mxu0 %v2281
  %2295 = vmatprep.subr.mxu0 0.0
  %2296 = vmatpush1.msra.mxu0 0.0
  %2297 = vmatprep.subr.mxu0 0.0
  %2298 = vmatpush1.msra.mxu0 0.0
  %2299 = vmatprep.subr.mxu0 0.0
  %2300 = vmatpush1.msra.mxu0 0.0
  %2301 = vmatprep.subr.mxu0 0.0
  %2302 = vmatpush1.msra.mxu0 0.0
  %2303 = vmatprep.subr.mxu0 0.0
  %2304 = vmatpush1.msra.mxu0 0.0
  %2305 = vmatprep.subr.mxu0 0.0
  %2306 = vmatpush1.msra.mxu0 0.0
  %2307 = vmatprep.subr.mxu0 0.0
  %2308 = vmatpush1.msra.mxu0 0.0
  %2309 = vmatprep.subr.mxu0 0.0
  %2310 = vmatpush1.msra.mxu0 0.0
  %2311 = vmatprep.subr.mxu0 0.0
  %2312 = vmatpush1.msra.mxu0 0.0
  %2313 = vmatprep.subr.mxu0 0.0
  %2314 = vmatpush1.msra.mxu0 0.0
  %2315 = vmatprep.subr.mxu0 0.0
  %2316 = vmatpush1.msra.mxu0 0.0
  %2317 = vmatprep.subr.mxu0 0.0
  %2318 = vmatpush1.msra.mxu0 0.0
  %2319 = vmatprep.subr.mxu0 0.0
  %2320 = vmatpush1.msra.mxu0 0.0
  %2321 = vmatprep.subr.mxu0 0.0
  %2322 = vmatpush1.msra.mxu0 0.0
  %2323 = vmatprep.subr.mxu0 0.0
  %2324 = vmatpush1.msra.mxu0 0.0
  %2325 = vmatprep.subr.mxu0 0.0
  %2326 = vmatpush1.msra.mxu0 0.0
  %2327 = vmatprep.subr.mxu0 0.0
  %2328 = vmatpush1.msra.mxu0 0.0
  %2329 = vmatprep.subr.mxu0 0.0
  %2330 = vmatpush1.msra.mxu0 0.0
  %2331 = vmatprep.subr.mxu0 0.0
  %2332 = vmatpush1.msra.mxu0 0.0
  %2333 = vmatprep.subr.mxu0 0.0
  %2334 = vmatpush1.msra.mxu0 0.0
  %2335 = vmatprep.subr.mxu0 0.0
  %2336 = vmatpush1.msra.mxu0 0.0
  %2337 = vmatprep.subr.mxu0 0.0
  %2338 = vmatpush1.msra.mxu0 0.0
  %2339 = vmatprep.subr.mxu0 0.0
  %2340 = vmatpush1.msra.mxu0 0.0
  %2341 = vmatprep.subr.mxu0 0.0
  %2342 = vmatpush1.msra.mxu0 0.0
  %2343 = vmatprep.subr.mxu0 0.0
  %2344 = vmatpush1.msra.mxu0 0.0
  %2345 = vmatprep.subr.mxu0 0.0
  %2346 = vmatpush1.msra.mxu0 0.0
  %2347 = vmatprep.subr.mxu0 0.0
  %2348 = vmatpush1.msra.mxu0 0.0
  %2349 = vmatprep.subr.mxu0 0.0
  %2350 = vmatpush1.msra.mxu0 0.0
  %2351 = vmatprep.subr.mxu0 0.0
  %2352 = vmatpush1.msra.mxu0 0.0
  %2353 = vmatprep.subr.mxu0 0.0
  %2354 = vmatpush1.msra.mxu0 0.0
  %2355 = vmatprep.subr.mxu0 0.0
  %2356 = vmatpush1.msra.mxu0 0.0
  %2357 = vmatprep.mubr.f32.mxu0 0.0
  %2358 = vmatmul.mubr.f32.gmra.mrb[0].mxu0 %v2288
  %v2359 = vpop.f32.mrb[0].mxu0
  %v2360 = vadd.f32 %v2286, %v2359
  %v2361 = vpop.f32.mrb[0].mxu0
  %2362 = vmatprep.mubr.f32.mxu0 0.0
  %2363 = vmatmul.mubr.f32.gmra.mrb[0].mxu0 %v2291
  %v2364 = vpop.f32.mrb[0].mxu0
  %v2365 = vadd.f32 %v2286, %v2364
  %v2366 = vpop.f32.mrb[0].mxu0
  %2367 = vdwg.mxu0
  %vm2368 = vcmp.gt.f32.partialorder %v2360, 0.0
  %vm2369 = vcmp.gt.f32.partialorder %v2365, 0.0
  %v2370 = vmul.f32 %v2360, 0.01
  %v2371 = vmul.f32 %v2365, 0.01
  %v2372 = vsel %vm2368, %v2360, %v2370
  %v2373 = vsel %vm2369, %v2365, %v2371
  %vm2374 = vcmask 31744
  %v2375 = vsel %vm2374, %v2372, 0.0
  %v2376 = vsel %vm2374, %v2373, 0.0
  %v2377 = vadd.f32 %v2375, %v2376
  %v2378 = vrot.slane %v2377, 4
  %v2379 = vadd.f32 %v2377, %v2378
  %v2380 = vrot.slane %v2379, 2
  %v2381 = vadd.f32 %v2379, %v2380
  %v2382 = vrot.slane %v2381, 1
  %v2383 = vadd.f32 %v2381, %v2382
  %v2384 = vmul.f32 %v2383, %v2111
  %v2385 = vsub.f32 %v2372, %v2384
  %v2386 = vsub.f32 %v2373, %v2384
  %v2387 = vmul.f32 %v2385, %v2385
  %v2388 = vmul.f32 %v2386, %v2386
  %v2389 = vsel %vm2374, %v2387, 0.0
  %v2390 = vsel %vm2374, %v2388, 0.0
  %v2391 = vadd.f32 %v2389, %v2390
  %v2392 = vrot.slane %v2391, 4
  %v2393 = vadd.f32 %v2391, %v2392
  %v2394 = vrot.slane %v2393, 2
  %v2395 = vadd.f32 %v2393, %v2394
  %v2396 = vrot.slane %v2395, 1
  %v2397 = vadd.f32 %v2395, %v2396
  %v2398 = vmul.f32 %v2397, %v2111
  %v2399 = vadd.f32 %v2398, 1e-05
  %v2400 = vrsqrt.pop %v2399
  %v2401 = vmul.f32 %v2385, %v2400
  %v2402 = vmul.f32 %v2386, %v2400
  %v2403 = vld [vmem:[%s2 + $0x3f] sm:$0x1]
  %v2404 = vlaneseq
  %v2405 = vshrl.u32 %v2404, 7
  %v2406 = vsub.s32 0, %v2405
  %v2407 = vrot.slane %v2403, %v2406
  %v2408 = vmul.f32 %v2401, %v2407
  %v2409 = vmul.f32 %v2402, %v2407
  %v2410 = vld [vmem:[%s2 + $0x40] sm:$0x1]
  %v2411 = vlaneseq
  %v2412 = vshrl.u32 %v2411, 7
  %v2413 = vsub.s32 0, %v2412
  %v2414 = vrot.slane %v2410, %v2413
  %v2415 = vadd.f32 %v2408, %v2414
  %v2416 = vadd.f32 %v2409, %v2414
  %v2417 = vld [vmem:[%s2 + $0x41] sm:$0xf]
  %v2418 = vld [vmem:[%s2 + $0x45] sm:$0x1]
  %v2419 = vlaneseq
  %v2420 = vshrl.u32 %v2419, 7
  %v2421 = vsub.s32 0, %v2420
  %v2422 = vrot.slane %v2418, %v2421
  %v2424 = vsel %vm2374, %v2415, 0
  %v2427 = vsel %vm2374, %v2416, 0
  %v2430 = vsel %vm1986, %v2417, 0
  %2432 = vmatprep.subr.mxu0 0.0
  %2433 = vmatpush1.msra.mxu0 %v2430
  %2434 = vmatprep.subr.mxu0 0.0
  %2435 = vmatpush1.msra.mxu0 0.0
  %2436 = vmatprep.subr.mxu0 0.0
  %2437 = vmatpush1.msra.mxu0 0.0
  %2438 = vmatprep.subr.mxu0 0.0
  %2439 = vmatpush1.msra.mxu0 0.0
  %2440 = vmatprep.subr.mxu0 0.0
  %2441 = vmatpush1.msra.mxu0 0.0
  %2442 = vmatprep.subr.mxu0 0.0
  %2443 = vmatpush1.msra.mxu0 0.0
  %2444 = vmatprep.subr.mxu0 0.0
  %2445 = vmatpush1.msra.mxu0 0.0
  %2446 = vmatprep.subr.mxu0 0.0
  %2447 = vmatpush1.msra.mxu0 0.0
  %2448 = vmatprep.subr.mxu0 0.0
  %2449 = vmatpush1.msra.mxu0 0.0
  %2450 = vmatprep.subr.mxu0 0.0
  %2451 = vmatpush1.msra.mxu0 0.0
  %2452 = vmatprep.subr.mxu0 0.0
  %2453 = vmatpush1.msra.mxu0 0.0
  %2454 = vmatprep.subr.mxu0 0.0
  %2455 = vmatpush1.msra.mxu0 0.0
  %2456 = vmatprep.subr.mxu0 0.0
  %2457 = vmatpush1.msra.mxu0 0.0
  %2458 = vmatprep.subr.mxu0 0.0
  %2459 = vmatpush1.msra.mxu0 0.0
  %2460 = vmatprep.subr.mxu0 0.0
  %2461 = vmatpush1.msra.mxu0 0.0
  %2462 = vmatprep.subr.mxu0 0.0
  %2463 = vmatpush1.msra.mxu0 0.0
  %2464 = vmatprep.subr.mxu0 0.0
  %2465 = vmatpush1.msra.mxu0 0.0
  %2466 = vmatprep.subr.mxu0 0.0
  %2467 = vmatpush1.msra.mxu0 0.0
  %2468 = vmatprep.subr.mxu0 0.0
  %2469 = vmatpush1.msra.mxu0 0.0
  %2470 = vmatprep.subr.mxu0 0.0
  %2471 = vmatpush1.msra.mxu0 0.0
  %2472 = vmatprep.subr.mxu0 0.0
  %2473 = vmatpush1.msra.mxu0 0.0
  %2474 = vmatprep.subr.mxu0 0.0
  %2475 = vmatpush1.msra.mxu0 0.0
  %2476 = vmatprep.subr.mxu0 0.0
  %2477 = vmatpush1.msra.mxu0 0.0
  %2478 = vmatprep.subr.mxu0 0.0
  %2479 = vmatpush1.msra.mxu0 0.0
  %2480 = vmatprep.subr.mxu0 0.0
  %2481 = vmatpush1.msra.mxu0 0.0
  %2482 = vmatprep.subr.mxu0 0.0
  %2483 = vmatpush1.msra.mxu0 0.0
  %2484 = vmatprep.subr.mxu0 0.0
  %2485 = vmatpush1.msra.mxu0 0.0
  %2486 = vmatprep.subr.mxu0 0.0
  %2487 = vmatpush1.msra.mxu0 0.0
  %2488 = vmatprep.subr.mxu0 0.0
  %2489 = vmatpush1.msra.mxu0 0.0
  %2490 = vmatprep.subr.mxu0 0.0
  %2491 = vmatpush1.msra.mxu0 0.0
  %2492 = vmatprep.subr.mxu0 0.0
  %2493 = vmatpush1.msra.mxu0 0.0
  %2494 = vmatprep.subr.mxu0 0.0
  %2495 = vmatpush1.msra.mxu0 0.0
  %2496 = vmatprep.mubr.f32.mxu0 0.0
  %2497 = vmatmul.mubr.f32.gmra.mrb[0].mxu0 %v2424
  %v2498 = vpop.f32.mrb[0].mxu0
  %v2499 = vadd.f32 %v2422, %v2498
  %v2500 = vpop.f32.mrb[0].mxu0
  %2501 = vmatprep.mubr.f32.mxu0 0.0
  %2502 = vmatmul.mubr.f32.gmra.mrb[0].mxu0 %v2427
  %v2503 = vpop.f32.mrb[0].mxu0
  %v2504 = vadd.f32 %v2422, %v2503
  %v2505 = vpop.f32.mrb[0].mxu0
  %2506 = vdwg.mxu0
  %vm2507 = vcmask 15360
  %2508 = vst.msk [vmem:[%s3] sm:$0xff] %vm2507, %v2499
  %2509 = vst.msk [vmem:[%s3 + $0x8] sm:$0xff] %vm2507, %v2504
  // Predicated region
  $region14: #{lstm_forward.1} parent=0 // pred_check
    _
  $region15: #{lstm_forward.1} parent=0 // pred_check_branch
    %2511 = sbr.rel (0) target = $region17
  $region16: #{lstm_forward.1} parent=0 // pred_region
    _
  $region17: #{lstm_forward.1} parent=0 // pred_fallthru
    _
  // Predicated region
  $region18: #{lstm_forward.1} parent=0 // pred_check
    _
  $region19: #{lstm_forward.1} parent=0 // pred_check_branch
    %2513 = sbr.rel (0) target = $region21
  $region20: #{lstm_forward.1} parent=0 // pred_region
    _
  $region21: #{lstm_forward.1} parent=0 // pred_fallthru
    _

</llo_original>
